<compile_context>
chip_gen: v7x
topology: tpu7x:2x2x1
jax: 0.10.0
libtpu: 0.0.40
codegen_flags: <defaults>
</compile_context>

<pallas_src>
import functools

import jax
import jax.numpy as jnp
import numpy as np
from jax.experimental import pallas as pl
from jax.experimental.pallas import tpu as pltpu

_EPS = 1e-7
_HI = jax.lax.Precision.HIGHEST


def _ada_kernel(x_ref, m_ref, w_ref, o_ref, col_ref, *, H, W, K, pad, C, Wp, Lout, Mh):
    """One batch sample per grid step.

    x_ref  : (1, C, Lext)   un-normalized, zero-padded + zero-margined flat planes
    m_ref  : (1, 1, Lext)   1.0 on the HxW interior, 0.0 on pad ring / margins
    w_ref  : (1, OC, R+1)   folded (pointwise @ depthwise) block-diag weights, bias last col
    o_ref  : (1, OC, Lout)  lane-dense output in the flattened *padded* domain
    col_ref: (R+1, Lout)    VMEM scratch: im2col slab (+ constant ones row for bias)
    """
    n = H * W
    R = K * K * C

    x = x_ref[0]                   # (C, Lext)
    mask = m_ref[0]                # (1, Lext)

    # --- per-channel spatial normalization (two-pass, unbiased, +eps after sqrt) ---
    mean = jnp.sum(x, axis=1, keepdims=True) * (1.0 / n)      # pads are 0 -> sum unaffected
    d = x - mean * mask                                       # exactly 0 outside interior
    var = jnp.sum(d * d, axis=1, keepdims=True) * (1.0 / (n - 1))
    inv = 1.0 / (jnp.sqrt(var) + _EPS)                        # C scalar divides only
    xn = d * inv                                              # normalized, zero halo/margin

    # --- im2col: each tap is a contiguous shifted slice of the flat padded plane ---
    for ki in range(K):
        for kj in range(K):
            tap = ki * K + kj
            off = Mh + (ki - pad) * Wp + (kj - pad)           # static offset in [0, 2*Mh]
            col_ref[tap * C:(tap + 1) * C, :] = xn[:, off:off + Lout]
    col_ref[R:R + 1, :] = jnp.ones((1, Lout), jnp.float32)    # bias row

    # --- single MXU matmul: depthwise + pointwise + bias all at once ---------------
    out = jnp.dot(w_ref[0], col_ref[...],
                  preferred_element_type=jnp.float32, precision=_HI)
    o_ref[0] = out.astype(o_ref.dtype)


def ada_conv2d(x, dw_kernels, pw_kernels, biases, *, in_channels, out_channels, groups):
    """Pallas implementation of AdaConv2D.forward.

    x          : (B, in_channels, H, W)
    dw_kernels : (B, out_channels, in_channels // groups, K, K)
    pw_kernels : (B, out_channels, out_channels // groups, 1, 1)
    biases     : (B * out_channels,)
    returns    : (B, out_channels, H, W)
    """
    # TODO(synk): fixed_batch_size / fixed_hw are config-only shape overrides in the
    # PyTorch module; not needed for this run.
    B, C, H, W = x.shape
    K = dw_kernels.shape[-1]
    pad = (K - 1) // 2
    Cg = in_channels // groups
    Og = out_channels // groups
    Hp, Wp = H + 2 * pad, W + 2 * pad
    L = Hp * Wp                                   # flattened padded plane size
    Lout = ((L + 127) // 128) * 128               # lane-dense output width
    Mh = pad * Wp + pad                           # max |flat shift| of any tap
    Lext = 2 * Mh + Lout                          # margined flat input width
    R = K * K * in_channels
    R1 = R + 1

    # ---- plain-JAX glue: flatten/pad x, interior mask, fold + pack weights --------
    x_pad = jnp.pad(x, ((0, 0), (0, 0), (pad, pad), (pad, pad)))
    x_flat = jnp.pad(x_pad.reshape(B, C, L),
                     ((0, 0), (0, 0), (Mh, Lext - Mh - L)))             # (B, C, Lext)
    mask = jnp.pad(jnp.ones((1, 1, H, W), jnp.float32),
                   ((0, 0), (0, 0), (pad, pad), (pad, pad)))
    mask = jnp.pad(mask.reshape(1, 1, L),
                   ((0, 0), (0, 0), (Mh, Lext - Mh - L)))               # (1, 1, Lext)

    # fold pointwise into depthwise per (b, g): comb = pw (Og,Og) @ dw (Og, Cg*K*K)
    dw = dw_kernels.reshape(B, groups, Og, Cg, K, K)
    pw = pw_kernels.reshape(B, groups, Og, Og)
    comb = jnp.einsum("bgop,bgpckl->bgoklc", pw, dw, precision=_HI)     # (B,G,Og,K,K,Cg)
    # block-diagonal over channels; column order = tap*C + g*Cg + c (tap-major)
    eye = jnp.eye(groups, dtype=comb.dtype)
    full = jnp.einsum("bgoklc,gh->bgoklhc", comb, eye, precision=_HI)   # (B,G,Og,K,K,G,Cg)
    full = full.reshape(B, out_channels, R)
    w_aug = jnp.concatenate(
        [full, biases.reshape(B, out_channels, 1).astype(full.dtype)], axis=-1)  # (B,OC,R+1)

    kernel = functools.partial(_ada_kernel, H=H, W=W, K=K, pad=pad, C=C,
                               Wp=Wp, Lout=Lout, Mh=Mh)

    out_flat = pl.pallas_call(
        kernel,
        out_shape=jax.ShapeDtypeStruct((B, out_channels, Lout), jnp.float32),
        grid=(B,),
        in_specs=[
            pl.BlockSpec((1, C, Lext), lambda b: (b, 0, 0)),
            pl.BlockSpec((1, 1, Lext), lambda b: (0, 0, 0)),            # constant mask
            pl.BlockSpec((1, out_channels, R1), lambda b: (b, 0, 0)),   # packed weights+bias
        ],
        out_specs=pl.BlockSpec((1, out_channels, Lout), lambda b: (b, 0, 0)),
        scratch_shapes=[pltpu.VMEM((R1, Lout), jnp.float32)],
        compiler_params=pltpu.CompilerParams(dimension_semantics=("parallel",)),
    )(x_flat, mask, w_aug)

    # valid outputs live at the interior positions of the flattened padded domain
    out = out_flat[:, :, :L].reshape(B, out_channels, Hp, Wp)[:, :, pad:pad + H, pad:pad + W]
    return out


def ada_conv2d_ref(x, dw_kernels, pw_kernels, biases, *, in_channels, out_channels, groups):
    """Pure-JAX reference mirroring the PyTorch forward (for verification)."""
    B, C, H, W = x.shape
    K = dw_kernels.shape[-1]
    pad = (K - 1) // 2
    Cg = in_channels // groups
    Og = out_channels // groups

    mean = jnp.mean(x, axis=(2, 3), keepdims=True)
    var = jnp.sum((x - mean) ** 2, axis=(2, 3), keepdims=True) / (H * W - 1)
    std = jnp.sqrt(var) + _EPS                       # torch.std is unbiased; +eps after sqrt
    xn = (x - mean) / std
    xp = jnp.pad(xn, ((0, 0), (0, 0), (pad, pad), (pad, pad)))

    out = jnp.zeros((B, out_channels, H, W), jnp.float32)
    for b in range(B):
        for g in range(groups):
            xg = xp[b, g * Cg:(g + 1) * Cg]                        # (Cg, Hp, Wp)
            wg = dw_kernels[b, g * Og:(g + 1) * Og]                # (Og, Cg, K, K)
            dw_out = jnp.zeros((Og, H, W), jnp.float32)
            for ki in range(K):
                for kj in range(K):
                    dw_out = dw_out + jnp.einsum(
                        "oc,chw->ohw", wg[:, :, ki, kj],
                        xg[:, ki:ki + H, kj:kj + W], precision=_HI)
            pwg = pw_kernels[b, g * Og:(g + 1) * Og, :, 0, 0]      # (Og, Og)
            bg = biases[b * out_channels + g * Og: b * out_channels + (g + 1) * Og]
            og = jnp.einsum("op,phw->ohw", pwg, dw_out, precision=_HI) + bg[:, None, None]
            out = out.at[b, g * Og:(g + 1) * Og].set(og)
    return out


if __name__ == "__main__":
    B, C_in, C_out, G = 2, 4, 4, 2
    H = W = 16
    K = 3

    key = jax.random.PRNGKey(0)
    kx, kdw, kpw, kb = jax.random.split(key, 4)
    x = jax.random.normal(kx, (B, C_in, H, W), dtype=jnp.float32)
    dw_kernels = 0.1 * jax.random.normal(kdw, (B, C_out, C_in // G, K, K), dtype=jnp.float32)
    pw_kernels = 0.1 * jax.random.normal(kpw, (B, C_out, C_out // G, 1, 1), dtype=jnp.float32)
    biases = 0.1 * jax.random.normal(kb, (B * C_out,), dtype=jnp.float32)

    out = ada_conv2d(x, dw_kernels, pw_kernels, biases,
                     in_channels=C_in, out_channels=C_out, groups=G)
    out = jax.block_until_ready(out)

    ref = ada_conv2d_ref(x, dw_kernels, pw_kernels, biases,
                         in_channels=C_in, out_channels=C_out, groups=G)
    ref = jax.block_until_ready(ref)

    assert out.shape == (B, C_out, H, W)
    np.testing.assert_allclose(np.asarray(out), np.asarray(ref), rtol=1e-4, atol=1e-5)
    print("KERNEL_OK")
</pallas_src>

<mosaic_0001>
module attributes {stable_mosaic.version = 11 : i64} {
  func.func @_ada_kernel(%arg0: i32, %arg1: memref<1x4x422xf32, #tpu.memory_space<vmem>>, %arg2: memref<1x1x422xf32, #tpu.memory_space<vmem>>, %arg3: memref<1x4x37xf32, #tpu.memory_space<vmem>>, %arg4: memref<1x4x384xf32, #tpu.memory_space<vmem>>, %arg5: memref<37x384xf32, #tpu.memory_space<vmem>>) attributes {dimension_semantics = [#tpu.dimension_semantics<parallel>], iteration_bounds = array<i64: 2>, scalar_prefetch = 0 : i64, scratch_operands = 1 : i64, tpu.core_type = #tpu.core_type<tc>, window_params = [{transform_indices = @transform_0, window_bounds = array<i64: 1, 4, 422>}, {pipeline_mode = #tpu.pipeline_mode<synchronous>, transform_indices = @transform_1, window_bounds = array<i64: 1, 1, 422>}, {transform_indices = @transform_2, window_bounds = array<i64: 1, 4, 37>}, {transform_indices = @transform_3, window_bounds = array<i64: 1, 4, 384>}]} {
    %c0 = arith.constant 0 : index
    %c0_0 = arith.constant 0 : index
    %c0_1 = arith.constant 0 : index
    %0 = vector.load %arg1[%c0, %c0_0, %c0_1] : memref<1x4x422xf32, #tpu.memory_space<vmem>>, vector<1x4x422xf32>
    %1 = vector.shape_cast %0 : vector<1x4x422xf32> to vector<4x422xf32>
    %c0_2 = arith.constant 0 : index
    %c0_3 = arith.constant 0 : index
    %c0_4 = arith.constant 0 : index
    %2 = vector.load %arg2[%c0_2, %c0_3, %c0_4] : memref<1x1x422xf32, #tpu.memory_space<vmem>>, vector<1x1x422xf32>
    %3 = vector.shape_cast %2 : vector<1x1x422xf32> to vector<1x422xf32>
    %cst = arith.constant dense<0.000000e+00> : vector<4xf32>
    %4 = vector.multi_reduction <add>, %1, %cst [1] : vector<4x422xf32> to vector<4xf32>
    %5 = vector.shape_cast %4 : vector<4xf32> to vector<4x1xf32>
    %cst_5 = arith.constant 3.906250e-03 : f32
    %6 = vector.broadcast %cst_5 : f32 to vector<4x1xf32>
    %7 = arith.mulf %5, %6 : vector<4x1xf32>
    %8 = vector.broadcast %7 : vector<4x1xf32> to vector<4x422xf32>
    %9 = vector.broadcast %3 : vector<1x422xf32> to vector<4x422xf32>
    %10 = arith.mulf %8, %9 : vector<4x422xf32>
    %11 = arith.subf %1, %10 : vector<4x422xf32>
    %12 = arith.mulf %11, %11 : vector<4x422xf32>
    %cst_6 = arith.constant dense<0.000000e+00> : vector<4xf32>
    %13 = vector.multi_reduction <add>, %12, %cst_6 [1] : vector<4x422xf32> to vector<4xf32>
    %14 = vector.shape_cast %13 : vector<4xf32> to vector<4x1xf32>
    %cst_7 = arith.constant 0.00392156886 : f32
    %15 = vector.broadcast %cst_7 : f32 to vector<4x1xf32>
    %16 = arith.mulf %14, %15 : vector<4x1xf32>
    %17 = math.sqrt %16 : vector<4x1xf32>
    %cst_8 = arith.constant 1.000000e-07 : f32
    %18 = vector.broadcast %cst_8 : f32 to vector<4x1xf32>
    %19 = arith.addf %17, %18 : vector<4x1xf32>
    %cst_9 = arith.constant 1.000000e+00 : f32
    %20 = vector.broadcast %cst_9 : f32 to vector<4x1xf32>
    %21 = arith.divf %20, %19 : vector<4x1xf32>
    %22 = vector.broadcast %21 : vector<4x1xf32> to vector<4x422xf32>
    %23 = arith.mulf %11, %22 : vector<4x422xf32>
    %24 = vector.extract_strided_slice %23 {offsets = [0, 0], sizes = [4, 384], strides = [1, 1]} : vector<4x422xf32> to vector<4x384xf32>
    %c0_10 = arith.constant 0 : index
    %c0_11 = arith.constant 0 : index
    %25 = vector.load %arg5[%c0_10, %c0_11] : memref<37x384xf32, #tpu.memory_space<vmem>>, vector<4x384xf32>
    tpu.vector_store %arg5[%c0_10, %c0_11], %24 {strides = array<i32>} : memref<37x384xf32, #tpu.memory_space<vmem>>, vector<4x384xf32>,
    %26 = vector.extract_strided_slice %23 {offsets = [0, 1], sizes = [4, 384], strides = [1, 1]} : vector<4x422xf32> to vector<4x384xf32>
    %c4 = arith.constant 4 : index
    %c0_12 = arith.constant 0 : index
    %27 = vector.load %arg5[%c4, %c0_12] : memref<37x384xf32, #tpu.memory_space<vmem>>, vector<4x384xf32>
    tpu.vector_store %arg5[%c4, %c0_12], %26 {strides = array<i32>} : memref<37x384xf32, #tpu.memory_space<vmem>>, vector<4x384xf32>,
    %28 = vector.extract_strided_slice %23 {offsets = [0, 2], sizes = [4, 384], strides = [1, 1]} : vector<4x422xf32> to vector<4x384xf32>
    %c8 = arith.constant 8 : index
    %c0_13 = arith.constant 0 : index
    %29 = vector.load %arg5[%c8, %c0_13] : memref<37x384xf32, #tpu.memory_space<vmem>>, vector<4x384xf32>
    tpu.vector_store %arg5[%c8, %c0_13], %28 {strides = array<i32>} : memref<37x384xf32, #tpu.memory_space<vmem>>, vector<4x384xf32>,
    %30 = vector.extract_strided_slice %23 {offsets = [0, 18], sizes = [4, 384], strides = [1, 1]} : vector<4x422xf32> to vector<4x384xf32>
    %c12 = arith.constant 12 : index
    %c0_14 = arith.constant 0 : index
    %31 = vector.load %arg5[%c12, %c0_14] : memref<37x384xf32, #tpu.memory_space<vmem>>, vector<4x384xf32>
    tpu.vector_store %arg5[%c12, %c0_14], %30 {strides = array<i32>} : memref<37x384xf32, #tpu.memory_space<vmem>>, vector<4x384xf32>,
    %32 = vector.extract_strided_slice %23 {offsets = [0, 19], sizes = [4, 384], strides = [1, 1]} : vector<4x422xf32> to vector<4x384xf32>
    %c16 = arith.constant 16 : index
    %c0_15 = arith.constant 0 : index
    %33 = vector.load %arg5[%c16, %c0_15] : memref<37x384xf32, #tpu.memory_space<vmem>>, vector<4x384xf32>
    tpu.vector_store %arg5[%c16, %c0_15], %32 {strides = array<i32>} : memref<37x384xf32, #tpu.memory_space<vmem>>, vector<4x384xf32>,
    %34 = vector.extract_strided_slice %23 {offsets = [0, 20], sizes = [4, 384], strides = [1, 1]} : vector<4x422xf32> to vector<4x384xf32>
    %c20 = arith.constant 20 : index
    %c0_16 = arith.constant 0 : index
    %35 = vector.load %arg5[%c20, %c0_16] : memref<37x384xf32, #tpu.memory_space<vmem>>, vector<4x384xf32>
    tpu.vector_store %arg5[%c20, %c0_16], %34 {strides = array<i32>} : memref<37x384xf32, #tpu.memory_space<vmem>>, vector<4x384xf32>,
    %36 = vector.extract_strided_slice %23 {offsets = [0, 36], sizes = [4, 384], strides = [1, 1]} : vector<4x422xf32> to vector<4x384xf32>
    %c24 = arith.constant 24 : index
    %c0_17 = arith.constant 0 : index
    %37 = vector.load %arg5[%c24, %c0_17] : memref<37x384xf32, #tpu.memory_space<vmem>>, vector<4x384xf32>
    tpu.vector_store %arg5[%c24, %c0_17], %36 {strides = array<i32>} : memref<37x384xf32, #tpu.memory_space<vmem>>, vector<4x384xf32>,
    %38 = vector.extract_strided_slice %23 {offsets = [0, 37], sizes = [4, 384], strides = [1, 1]} : vector<4x422xf32> to vector<4x384xf32>
    %c28 = arith.constant 28 : index
    %c0_18 = arith.constant 0 : index
    %39 = vector.load %arg5[%c28, %c0_18] : memref<37x384xf32, #tpu.memory_space<vmem>>, vector<4x384xf32>
    tpu.vector_store %arg5[%c28, %c0_18], %38 {strides = array<i32>} : memref<37x384xf32, #tpu.memory_space<vmem>>, vector<4x384xf32>,
    %40 = vector.extract_strided_slice %23 {offsets = [0, 38], sizes = [4, 384], strides = [1, 1]} : vector<4x422xf32> to vector<4x384xf32>
    %c32 = arith.constant 32 : index
    %c0_19 = arith.constant 0 : index
    %41 = vector.load %arg5[%c32, %c0_19] : memref<37x384xf32, #tpu.memory_space<vmem>>, vector<4x384xf32>
    tpu.vector_store %arg5[%c32, %c0_19], %40 {strides = array<i32>} : memref<37x384xf32, #tpu.memory_space<vmem>>, vector<4x384xf32>,
    %cst_20 = arith.constant 1.000000e+00 : f32
    %42 = vector.broadcast %cst_20 : f32 to vector<1x384xf32>
    %c36 = arith.constant 36 : index
    %c0_21 = arith.constant 0 : index
    %43 = vector.load %arg5[%c36, %c0_21] : memref<37x384xf32, #tpu.memory_space<vmem>>, vector<1x384xf32>
    tpu.vector_store %arg5[%c36, %c0_21], %42 {strides = array<i32>} : memref<37x384xf32, #tpu.memory_space<vmem>>, vector<1x384xf32>,
    %c0_22 = arith.constant 0 : index
    %c0_23 = arith.constant 0 : index
    %c0_24 = arith.constant 0 : index
    %44 = vector.load %arg3[%c0_22, %c0_23, %c0_24] : memref<1x4x37xf32, #tpu.memory_space<vmem>>, vector<1x4x37xf32>
    %45 = vector.shape_cast %44 : vector<1x4x37xf32> to vector<4x37xf32>
    %c0_25 = arith.constant 0 : index
    %c0_26 = arith.constant 0 : index
    %46 = vector.load %arg5[%c0_25, %c0_26] : memref<37x384xf32, #tpu.memory_space<vmem>>, vector<37x384xf32>
    %cst_27 = arith.constant dense<0.000000e+00> : vector<4x384xf32>
    %47 = tpu.matmul %45, %46, %cst_27 {dimension_numbers = #tpu.dot_dimension_numbers<[1], [0], [0], [1], [0, 0, 1, 1], [], []>, precision = #tpu.contract_precision<fp32>} : vector<4x37xf32>, vector<37x384xf32>, vector<4x384xf32> -> vector<4x384xf32>
    %c0_28 = arith.constant 0 : index
    %c0_29 = arith.constant 0 : index
    %c0_30 = arith.constant 0 : index
    %48 = vector.load %arg4[%c0_28, %c0_29, %c0_30] : memref<1x4x384xf32, #tpu.memory_space<vmem>>, vector<1x4x384xf32>
    %49 = vector.shape_cast %48 : vector<1x4x384xf32> to vector<4x384xf32>
    %50 = vector.shape_cast %47 : vector<4x384xf32> to vector<1x4x384xf32>
    tpu.vector_store %arg4[%c0_28, %c0_29, %c0_30], %50 {strides = array<i32>} : memref<1x4x384xf32, #tpu.memory_space<vmem>>, vector<1x4x384xf32>,
    return
  }
  func.func @transform_0(%arg0: i32) -> (i32, i32, i32) {
    %c0_i32 = arith.constant 0 : i32
    %c0_i32_0 = arith.constant 0 : i32
    %c0_i32_1 = arith.constant 0 : i32
    return %arg0, %c0_i32, %c0_i32_0 : i32, i32, i32
  }
  func.func @transform_1(%arg0: i32) -> (i32, i32, i32) {
    %c0_i32 = arith.constant 0 : i32
    %c0_i32_0 = arith.constant 0 : i32
    %c0_i32_1 = arith.constant 0 : i32
    %c0_i32_2 = arith.constant 0 : i32
    return %c0_i32, %c0_i32_0, %c0_i32_1 : i32, i32, i32
  }
  func.func @transform_2(%arg0: i32) -> (i32, i32, i32) {
    %c0_i32 = arith.constant 0 : i32
    %c0_i32_0 = arith.constant 0 : i32
    %c0_i32_1 = arith.constant 0 : i32
    return %arg0, %c0_i32, %c0_i32_0 : i32, i32, i32
  }
  func.func @transform_3(%arg0: i32) -> (i32, i32, i32) {
    %c0_i32 = arith.constant 0 : i32
    %c0_i32_0 = arith.constant 0 : i32
    %c0_i32_1 = arith.constant 0 : i32
    return %arg0, %c0_i32, %c0_i32_0 : i32, i32, i32
  }
}

</mosaic_0001>

<llo_original>
// kernel: tpu_custom_call.1
$region0: #{tpu_custom_call.1}
  #allocation0 [shape = 'u32[]', space=smem, size = 0x4, offset = 0x4, fixed_abs, tag = 'smem constant byte address 0x4 - core index']
  #allocation1 [shape = 'u32[144,128]{1,0:T(1,128)}', space=vmem, size = 0x12000, scoped, tag = 'internal scratch']
  #allocation2 [shape = 'f32[37,384]{1,0:T(8,128)}', space=vmem, size = 0xf000, scoped, tag = 'scratch operand']
  %s0 = inlined_call_operand.hbm [shape: f32[2,4,422], index: 0, kind: input, shape index: {}]
  %s1 = inlined_call_operand.hbm [shape: f32[1,1,422], index: 1, kind: input, shape index: {}]
  %s2 = inlined_call_operand.hbm [shape: f32[2,4,37], index: 2, kind: input, shape index: {}]
  %s3 = inlined_call_operand.hbm [shape: f32[2,4,384], index: 3, kind: output, shape index: {}]
  %s4 = sld [smem:[#allocation0]]
  $region57: #{tpu_custom_call.1} parent=0
    _
  %s6 = ssub.s32 1, %s4
  %s7 = scalar_select 0, %s6, %s4
  $region1: #{tpu_custom_call.1} parent=0
    #allocation3 [shape = 'u8[16384]{0}', space=vmem, size = 0x4000, scoped, tag = 'input window, operand 0']
    #allocation4 [shape = 's32[2]{0}', space=sflag, size = 0x8, scoped, tag = 'scoped memory for tpu_custom_call.1']
    #allocation5 [shape = 's32[2]{0}', space=sflag, size = 0x8, scoped, tag = 'scoped memory for tpu_custom_call.1']
    #allocation6 [shape = 'u8[2048]{0}', space=vmem, size = 0x800, scoped, tag = 'input window, operand 1, single buffered']
    #allocation7 [shape = 's32[1]{0}', space=sflag, size = 0x4, scoped, tag = 'scoped memory for tpu_custom_call.1']
    #allocation8 [shape = 'u8[4096]{0}', space=vmem, size = 0x1000, scoped, tag = 'input window, operand 2']
    #allocation9 [shape = 'u8[12288]{0}', space=vmem, size = 0x3000, scoped, tag = 'output window, operand 0']
    %8 = vsyncpa [#allocation4], 0
    %s9 = scalar_lea.sflag [#allocation4], 1
    %10 = vsyncpa %s9, 0
    %11 = vsyncpa [#allocation7], 0
    %12 = vsyncpa [#allocation5], 0
    %s13 = scalar_lea.sflag [#allocation5], 1
    %14 = vsyncpa %s13, 0
    loop: start=0, step=1, limit=4
    $region2: #{tpu_custom_call.1} parent=1 // loop_pre_header
      _
    $region3: #{tpu_custom_call.1} parent=1 // loop_header
      %s16 = sphi 0, %s20
      %p17 = scmp.ge.s32.totalorder %s16, 4
      %s26 = sphi 0, %s28
      %s29 = sphi 0, %s26
      %s30 = sphi 0, %s29
      %s46 = sphi 0, %s30
      %s50 = sphi 0, %s50
      %s52 = sphi 0, %s50
      %s53 = sphi 0, %s52
      %s67 = sphi 0, %s53
      %s73 = sphi 0, %s75
      %s76 = sphi 0, %s73
      %s77 = sphi 0, %s76
      %s93 = sphi 0, %s77
      %s99 = sphi 0, %s101
      %s102 = sphi 0, %s99
      %s103 = sphi 0, %s102
      %s119 = sphi 0, %s103
    $region4: #{tpu_custom_call.1} parent=1 // loop_header_branch
      %19 = sbr.rel (%p17) target = $region8
    $region5: #{tpu_custom_call.1} parent=1 // loop_body
      %s21 = ssub.s32 %s16, 1
      %s22 = ssub.s32 %s16, 2
      %s23 = sadd.s32 %s16, 1
      %s24 = ssub.s32 %s16, %s23
      %p25 = scmp.eq.s32.totalorder %s24, 0
      %s27 = sadd.s32 %s26, 1
      %s28 = scalar_select %p25, %s26, %s27
      %p31 = pneg %p25
      %p32 = scmp.eq.s32.totalorder %s16, 1
      %p33 = por %p31, %p32
      %p34 = scmp.ne.s32.totalorder %s26, %s29
      %p35 = scmp.eq.s32.totalorder %s16, 0
      %p36 = por %p34, %p35
      %p37 = scmp.ne.s32.totalorder %s26, %s29
      %p38 = scmp.eq.s32.totalorder %s21, 1
      %p39 = por %p37, %p38
      %p40 = scmp.ne.s32.totalorder %s29, %s30
      %p41 = scmp.eq.s32.totalorder %s21, 0
      %p42 = por %p40, %p41
      %p43 = scmp.ne.s32.totalorder %s29, %s30
      %p44 = scmp.eq.s32.totalorder %s22, 1
      %p45 = por %p43, %p44
      %p47 = scmp.ne.s32.totalorder %s30, %s46
      %p48 = scmp.eq.s32.totalorder %s22, 0
      %p49 = por %p47, %p48
      %s51 = sadd.s32 %s50, 1
      %p54 = scmp.eq.s32.totalorder %s16, 1
      %p55 = scmp.ne.s32.totalorder %s50, %s52
      %p56 = scmp.eq.s32.totalorder %s16, 0
      %p57 = por %p55, %p56
      %p58 = scmp.ne.s32.totalorder %s50, %s52
      %p59 = scmp.eq.s32.totalorder %s21, 1
      %p60 = por %p58, %p59
      %p61 = scmp.ne.s32.totalorder %s52, %s53
      %p62 = scmp.eq.s32.totalorder %s21, 0
      %p63 = por %p61, %p62
      %p64 = scmp.ne.s32.totalorder %s52, %s53
      %p65 = scmp.eq.s32.totalorder %s22, 1
      %p66 = por %p64, %p65
      %p68 = scmp.ne.s32.totalorder %s53, %s67
      %p69 = scmp.eq.s32.totalorder %s22, 0
      %p70 = por %p68, %p69
      %s71 = ssub.s32 %s16, %s23
      %p72 = scmp.eq.s32.totalorder %s71, 0
      %s74 = sadd.s32 %s73, 1
      %s75 = scalar_select %p72, %s73, %s74
      %p78 = pneg %p72
      %p79 = scmp.eq.s32.totalorder %s16, 1
      %p80 = por %p78, %p79
      %p81 = scmp.ne.s32.totalorder %s73, %s76
      %p82 = scmp.eq.s32.totalorder %s16, 0
      %p83 = por %p81, %p82
      %p84 = scmp.ne.s32.totalorder %s73, %s76
      %p85 = scmp.eq.s32.totalorder %s21, 1
      %p86 = por %p84, %p85
      %p87 = scmp.ne.s32.totalorder %s76, %s77
      %p88 = scmp.eq.s32.totalorder %s21, 0
      %p89 = por %p87, %p88
      %p90 = scmp.ne.s32.totalorder %s76, %s77
      %p91 = scmp.eq.s32.totalorder %s22, 1
      %p92 = por %p90, %p91
      %p94 = scmp.ne.s32.totalorder %s77, %s93
      %p95 = scmp.eq.s32.totalorder %s22, 0
      %p96 = por %p94, %p95
      %s97 = ssub.s32 %s16, %s23
      %p98 = scmp.eq.s32.totalorder %s97, 0
      %s100 = sadd.s32 %s99, 1
      %s101 = scalar_select %p98, %s99, %s100
      %p104 = pneg %p98
      %p105 = scmp.eq.s32.totalorder %s16, 1
      %p106 = por %p104, %p105
      %p107 = scmp.ne.s32.totalorder %s99, %s102
      %p108 = scmp.eq.s32.totalorder %s16, 0
      %p109 = por %p107, %p108
      %p110 = scmp.ne.s32.totalorder %s99, %s102
      %p111 = scmp.eq.s32.totalorder %s21, 1
      %p112 = por %p110, %p111
      %p113 = scmp.ne.s32.totalorder %s102, %s103
      %p114 = scmp.eq.s32.totalorder %s21, 0
      %p115 = por %p113, %p114
      %p116 = scmp.ne.s32.totalorder %s102, %s103
      %p117 = scmp.eq.s32.totalorder %s22, 1
      %p118 = por %p116, %p117
      %p120 = scmp.ne.s32.totalorder %s103, %s119
      %p121 = scmp.eq.s32.totalorder %s22, 0
      %p122 = por %p120, %p121
      %p123 = scmp.le.s32.totalorder 1, %s16
      %p124 = scmp.lt.s32.totalorder %s16, 3
      %p125 = pnand %p123, %p124
      %p126 = pneg %p125
      // Predicated region
      $region9: #{tpu_custom_call.1} parent=5 // pred_check
        _
      $region10: #{tpu_custom_call.1} parent=5 // pred_check_branch
        %128 = sbr.rel (%p125) target = $region12
      $region11: #{tpu_custom_call.1} parent=5 // pred_region
        %s129 = ssub.s32 %s16, 1
        // Predicated region
        $region13: #{tpu_custom_call.1} parent=11 // pred_check
          %p130 = pneg %p63
        $region14: #{tpu_custom_call.1} parent=11 // pred_check_branch
          %132 = sbr.rel (%p130) target = $region16
        $region15: #{tpu_custom_call.1} parent=11 // pred_region
          %s134 = ssub.s32 64, 64
          %135 = vsyncadd [#allocation7], %s134
          %s137 = sshll.u32 [#allocation6], 4
          %s138 = int_to_ptr.vmem [resolvable:$true] %s137
          %140 = dma.hbm_to_vmem [thread:$0]  %s1, 64, %s138, [#allocation7]
        $region16: #{tpu_custom_call.1} parent=11 // pred_fallthru
          _
      $region12: #{tpu_custom_call.1} parent=5 // pred_fallthru
        _
      %p141 = scmp.lt.s32.totalorder %s16, 2
      // Predicated region
      $region17: #{tpu_custom_call.1} parent=5 // pred_check
        %p142 = pneg %p141
      $region18: #{tpu_custom_call.1} parent=5 // pred_check_branch
        %144 = sbr.rel (%p142) target = $region20
      $region19: #{tpu_custom_call.1} parent=5 // pred_region
        // Predicated region
        $region21: #{tpu_custom_call.1} parent=19 // pred_check
          %p145 = pneg %p36
        $region22: #{tpu_custom_call.1} parent=19 // pred_check_branch
          %147 = sbr.rel (%p145) target = $region24
        $region23: #{tpu_custom_call.1} parent=19 // pred_region
          %s148 = sand.u32 %s16, 1
          %s149 = scalar_lea.sflag [#allocation4], %s148
          %s150 = sand.u32 %s26, 1
          %s151 = smul.addr %s150, 16
          %s152 = scalar_lea.vmem [#allocation3], %s151
          %s154 = ssub.s32 256, 256
          %155 = vsyncadd %s149, %s154
          %s156 = smul.addr %s16, 4
          %s157 = smul.addr %s156, 64
          %s158 = scalar_lea.hbm %s0, %s157
          %s160 = sshll.u32 %s152, 4
          %s161 = int_to_ptr.vmem [resolvable:$true] %s160
          %163 = dma.hbm_to_vmem [thread:$0]  %s158, 256, %s161, %s149
        $region24: #{tpu_custom_call.1} parent=19 // pred_fallthru
          _
        // Predicated region
        $region25: #{tpu_custom_call.1} parent=19 // pred_check
          %p164 = pneg %p83
        $region26: #{tpu_custom_call.1} parent=19 // pred_check_branch
          %166 = sbr.rel (%p164) target = $region28
        $region27: #{tpu_custom_call.1} parent=19 // pred_region
          %s167 = sand.u32 %s16, 1
          %s168 = scalar_lea.sflag [#allocation4], %s167
          %s169 = sand.u32 %s73, 1
          %s170 = smul.addr %s169, 4
          %s171 = scalar_lea.vmem [#allocation8], %s170
          %s173 = ssub.s32 64, 64
          %174 = vsyncadd %s168, %s173
          %s175 = smul.addr %s16, 64
          %s176 = scalar_lea.hbm %s2, %s175
          %s178 = sshll.u32 %s171, 4
          %s179 = int_to_ptr.vmem [resolvable:$true] %s178
          %181 = dma.hbm_to_vmem [thread:$0]  %s176, 64, %s179, %s168
        $region28: #{tpu_custom_call.1} parent=19 // pred_fallthru
          _
      $region20: #{tpu_custom_call.1} parent=5 // pred_fallthru
        _
      %p182 = scmp.le.s32.totalorder 1, %s16
      %p183 = scmp.lt.s32.totalorder %s16, 3
      %p184 = pnand %p182, %p183
      %p185 = pneg %p184
      // Predicated region
      $region29: #{tpu_custom_call.1} parent=5 // pred_check
        _
      $region30: #{tpu_custom_call.1} parent=5 // pred_check_branch
        %187 = sbr.rel (%p184) target = $region32
      $region31: #{tpu_custom_call.1} parent=5 // pred_region
        %s188 = ssub.s32 %s16, 1
        %s189 = sand.u32 %s21, 1
        %s190 = scalar_lea.sflag [#allocation4], %s189
        %s191 = sand.u32 %s29, 1
        %s192 = smul.addr %s191, 16
        %s193 = scalar_lea.vmem [#allocation3], %s192
        // Predicated region
        $region33: #{tpu_custom_call.1} parent=31 // pred_check
          %p194 = pneg %p42
        $region34: #{tpu_custom_call.1} parent=31 // pred_check_branch
          %196 = sbr.rel (%p194) target = $region36
        $region35: #{tpu_custom_call.1} parent=31 // pred_region
          %197 = dma.done %s190, 256
        $region36: #{tpu_custom_call.1} parent=31 // pred_fallthru
          _
        // Predicated region
        $region37: #{tpu_custom_call.1} parent=31 // pred_check
          %p198 = pneg %p63
        $region38: #{tpu_custom_call.1} parent=31 // pred_check_branch
          %200 = sbr.rel (%p198) target = $region40
        $region39: #{tpu_custom_call.1} parent=31 // pred_region
          %201 = dma.done [#allocation7], 64
        $region40: #{tpu_custom_call.1} parent=31 // pred_fallthru
          _
        %s202 = sand.u32 %s21, 1
        %s203 = scalar_lea.sflag [#allocation4], %s202
        %s204 = sand.u32 %s76, 1
        %s205 = smul.addr %s204, 4
        %s206 = scalar_lea.vmem [#allocation8], %s205
        // Predicated region
        $region41: #{tpu_custom_call.1} parent=31 // pred_check
          %p207 = pneg %p89
        $region42: #{tpu_custom_call.1} parent=31 // pred_check_branch
          %209 = sbr.rel (%p207) target = $region44
        $region43: #{tpu_custom_call.1} parent=31 // pred_region
          %210 = dma.done %s203, 64
        $region44: #{tpu_custom_call.1} parent=31 // pred_fallthru
          _
        %s211 = sand.u32 %s21, 1
        %s212 = scalar_lea.sflag [#allocation4], %s211
        %s213 = sand.u32 %s29, 1
        %s214 = smul.addr %s213, 16
        %s215 = scalar_lea.vmem [#allocation3], %s214
        %p216 = pneg %p42
        %p217 = pneg %p39
        %p218 = pneg %p63
        %p219 = pneg %p60
        %s220 = sand.u32 %s21, 1
        %s221 = scalar_lea.sflag [#allocation4], %s220
        %s222 = sand.u32 %s76, 1
        %s223 = smul.addr %s222, 4
        %s224 = scalar_lea.vmem [#allocation8], %s223
        %p225 = pneg %p89
        %p226 = pneg %p86
        %p227 = pneg %p115
        %p228 = pneg %p112
        %s229 = sand.u32 %s102, 1
        %s230 = scalar_lea.sflag [#allocation5], %s229
        %s231 = sand.u32 %s102, 1
        %s232 = smul.addr %s231, 12
        %s233 = scalar_lea.vmem [#allocation9], %s232
        %v234 = vld [vmem:[%s193] sm:$0xff]
        %v235 = vld [vmem:[%s193 + $0x8] sm:$0xff]
        %v236 = vld [vmem:[#allocation6] sm:$0xf]
        %v239 = vcombine.high %v234, %v234
        %v240 = vcombine.high %v235, %v235
        %vm243 = vcmask 1043456
        %v244 = vsel %vm243, %v234, 0.0
        %v245 = vsel %vm243, %v239, 0.0
        %v246 = vadd.f32 %v244, %v245
        %v247 = vsel %vm243, %v235, 0.0
        %v248 = vadd.f32 %v246, %v247
        %vm249 = vcmask 306176
        %v250 = vsel %vm249, %v240, 0.0
        %v251 = vadd.f32 %v248, %v250
        %252 = vadd.xlane.f32.xlu0 %v251
        %v253 = vpop.xlane.xlu0 %252
        %v254 = vmul.f32 %v253, 0.00390625
        %v256 = vlaneseq
        %v257 = vshrl.u32 %v256, 7
        %v258 = vsub.s32 0, %v257
        %v259 = vrot.slane %v236, %v258
        %v260 = vlaneseq
        %v261 = vshrl.u32 %v260, 7
        %v262 = vsub.s32 1, %v261
        %v263 = vrot.slane %v236, %v262
        %v264 = vlaneseq
        %v265 = vshrl.u32 %v264, 7
        %v266 = vsub.s32 2, %v265
        %v267 = vrot.slane %v236, %v266
        %v268 = vlaneseq
        %v269 = vshrl.u32 %v268, 7
        %v270 = vsub.s32 3, %v269
        %v271 = vrot.slane %v236, %v270
        %v276 = vmul.f32 %v254, %v259
        %v277 = vmul.f32 %v254, %v263
        %v278 = vmul.f32 %v254, %v267
        %v279 = vmul.f32 %v254, %v271
        %v284 = vcombine.low %v276, %v277
        %v285 = vcombine.low %v278, %v279
        %v288 = vsub.f32 %v234, %v284
        %v289 = vsub.f32 %v235, %v285
        %v290 = vmul.f32 %v288, %v288
        %v291 = vmul.f32 %v289, %v289
        %v294 = vcombine.high %v290, %v290
        %v295 = vcombine.high %v291, %v291
        %v298 = vsel %vm243, %v290, 0.0
        %v299 = vsel %vm243, %v294, 0.0
        %v300 = vadd.f32 %v298, %v299
        %v301 = vsel %vm243, %v291, 0.0
        %v302 = vadd.f32 %v300, %v301
        %v303 = vsel %vm249, %v295, 0.0
        %v304 = vadd.f32 %v302, %v303
        %305 = vadd.xlane.f32.xlu0 %v304
        %v306 = vpop.xlane.xlu0 %305
        %v307 = vmul.f32 %v306, 0.003921569
        %v308 = vrsqrt.pop %v307
        %v309 = vmul.f32 %v307, %v308
        %vm310 = vcmp.eq.f32.partialorder %v307, inf
        %v311 = vsel %vm310, %v307, %v309
        %vm312 = vcmp.eq.f32.partialorder %v307, 0.0
        %v313 = vand.u32 %v307, 2147483648
        %v314 = vsel %vm312, %v313, %v311
        %v315 = vadd.f32 %v314, 1e-07
        %v316 = vrcp.pop %v315
        %v317 = vmul.f32 1.0, %v316
        %v320 = vunpack.c.l.s4 839922192
        %v321 = vunpack.c.0.s8 %v320
        %v322 = vlaneseq
        %v323 = vshrl.u32 %v322, 7
        %v324 = vsub.s32 %v321, %v323
        %v325 = vrot.slane %v317, %v324
        %v327 = vmul.f32 %v288, %v325
        %v328 = vmul.f32 %v289, %v325
        %v331 = vcombine.high %v327, %v327
        %333 = vst [vmem:[#allocation2] sm:$0xf] %v327
        %334 = vst [vmem:[#allocation2 + $0x8] sm:$0xf] %v331
        %335 = vst [vmem:[#allocation2 + $0x10] sm:$0xf] %v328
        %v336 = vcombine.low %v327, %v327
        %v337 = vcombine.low %v328, %v328
        %338 = vrot.lane.b32.xlu0 %v336, 127
        %v339 = vpop.permute.xlu0 %338
        %340 = vrot.lane.b32.xlu0 %v327, 127
        %v341 = vpop.permute.xlu0 %340
        %342 = vrot.lane.b32.xlu0 %v337, 127
        %v343 = vpop.permute.xlu0 %342
        %344 = vrot.lane.b32.xlu0 %v328, 127
        %v345 = vpop.permute.xlu0 %344
        %vm346 = vcmask 1039360
        %v347 = vsel %vm346, %v339, %v341
        %v348 = vsel %vm346, %v341, %v343
        %v349 = vsel %vm346, %v343, %v345
        %353 = vst [vmem:[#allocation2] sm:$0xf0] %v347
        %354 = vst [vmem:[#allocation2 + $0x8] sm:$0xf0] %v348
        %355 = vst [vmem:[#allocation2 + $0x10] sm:$0xf0] %v349
        %v356 = vcombine.high %v328, %v328
        %357 = vrot.lane.b32.xlu0 %v327, 126
        %v358 = vpop.permute.xlu0 %357
        %359 = vrot.lane.b32.xlu0 %v331, 126
        %v360 = vpop.permute.xlu0 %359
        %361 = vrot.lane.b32.xlu0 %v328, 126
        %v362 = vpop.permute.xlu0 %361
        %363 = vrot.lane.b32.xlu0 %v356, 126
        %v364 = vpop.permute.xlu0 %363
        %vm365 = vcmask 1031168
        %v366 = vsel %vm365, %v358, %v360
        %v367 = vsel %vm365, %v360, %v362
        %v368 = vsel %vm365, %v362, %v364
        %372 = vst [vmem:[#allocation2 + $0x18] sm:$0xf] %v366
        %373 = vst [vmem:[#allocation2 + $0x20] sm:$0xf] %v367
        %374 = vst [vmem:[#allocation2 + $0x28] sm:$0xf] %v368
        %375 = vrot.lane.b32.xlu0 %v336, 110
        %v376 = vpop.permute.xlu0 %375
        %377 = vrot.lane.b32.xlu0 %v327, 110
        %v378 = vpop.permute.xlu0 %377
        %379 = vrot.lane.b32.xlu0 %v337, 110
        %v380 = vpop.permute.xlu0 %379
        %381 = vrot.lane.b32.xlu0 %v328, 110
        %v382 = vpop.permute.xlu0 %381
        %vm383 = vcmask 900096
        %v384 = vsel %vm383, %v376, %v378
        %v385 = vsel %vm383, %v378, %v380
        %v386 = vsel %vm383, %v380, %v382
        %390 = vst [vmem:[#allocation2 + $0x18] sm:$0xf0] %v384
        %391 = vst [vmem:[#allocation2 + $0x20] sm:$0xf0] %v385
        %392 = vst [vmem:[#allocation2 + $0x28] sm:$0xf0] %v386
        %393 = vrot.lane.b32.xlu0 %v327, 109
        %v394 = vpop.permute.xlu0 %393
        %395 = vrot.lane.b32.xlu0 %v331, 109
        %v396 = vpop.permute.xlu0 %395
        %397 = vrot.lane.b32.xlu0 %v328, 109
        %v398 = vpop.permute.xlu0 %397
        %399 = vrot.lane.b32.xlu0 %v356, 109
        %v400 = vpop.permute.xlu0 %399
        %vm401 = vcmask 891904
        %v402 = vsel %vm401, %v394, %v396
        %v403 = vsel %vm401, %v396, %v398
        %v404 = vsel %vm401, %v398, %v400
        %408 = vst [vmem:[#allocation2 + $0x30] sm:$0xf] %v402
        %409 = vst [vmem:[#allocation2 + $0x38] sm:$0xf] %v403
        %410 = vst [vmem:[#allocation2 + $0x40] sm:$0xf] %v404
        %411 = vrot.lane.b32.xlu0 %v336, 108
        %v412 = vpop.permute.xlu0 %411
        %413 = vrot.lane.b32.xlu0 %v327, 108
        %v414 = vpop.permute.xlu0 %413
        %415 = vrot.lane.b32.xlu0 %v337, 108
        %v416 = vpop.permute.xlu0 %415
        %417 = vrot.lane.b32.xlu0 %v328, 108
        %v418 = vpop.permute.xlu0 %417
        %vm419 = vcmask 883712
        %v420 = vsel %vm419, %v412, %v414
        %v421 = vsel %vm419, %v414, %v416
        %v422 = vsel %vm419, %v416, %v418
        %426 = vst [vmem:[#allocation2 + $0x30] sm:$0xf0] %v420
        %427 = vst [vmem:[#allocation2 + $0x38] sm:$0xf0] %v421
        %428 = vst [vmem:[#allocation2 + $0x40] sm:$0xf0] %v422
        %429 = vrot.lane.b32.xlu0 %v327, 92
        %v430 = vpop.permute.xlu0 %429
        %431 = vrot.lane.b32.xlu0 %v331, 92
        %v432 = vpop.permute.xlu0 %431
        %433 = vrot.lane.b32.xlu0 %v328, 92
        %v434 = vpop.permute.xlu0 %433
        %435 = vrot.lane.b32.xlu0 %v356, 92
        %v436 = vpop.permute.xlu0 %435
        %vm437 = vcmask 752640
        %v438 = vsel %vm437, %v430, %v432
        %v439 = vsel %vm437, %v432, %v434
        %v440 = vsel %vm437, %v434, %v436
        %444 = vst [vmem:[#allocation2 + $0x48] sm:$0xf] %v438
        %445 = vst [vmem:[#allocation2 + $0x50] sm:$0xf] %v439
        %446 = vst [vmem:[#allocation2 + $0x58] sm:$0xf] %v440
        %447 = vrot.lane.b32.xlu0 %v336, 91
        %v448 = vpop.permute.xlu0 %447
        %449 = vrot.lane.b32.xlu0 %v327, 91
        %v450 = vpop.permute.xlu0 %449
        %451 = vrot.lane.b32.xlu0 %v337, 91
        %v452 = vpop.permute.xlu0 %451
        %453 = vrot.lane.b32.xlu0 %v328, 91
        %v454 = vpop.permute.xlu0 %453
        %vm455 = vcmask 744448
        %v456 = vsel %vm455, %v448, %v450
        %v457 = vsel %vm455, %v450, %v452
        %v458 = vsel %vm455, %v452, %v454
        %462 = vst [vmem:[#allocation2 + $0x48] sm:$0xf0] %v456
        %463 = vst [vmem:[#allocation2 + $0x50] sm:$0xf0] %v457
        %464 = vst [vmem:[#allocation2 + $0x58] sm:$0xf0] %v458
        %465 = vrot.lane.b32.xlu0 %v327, 90
        %v466 = vpop.permute.xlu0 %465
        %467 = vrot.lane.b32.xlu0 %v331, 90
        %v468 = vpop.permute.xlu0 %467
        %469 = vrot.lane.b32.xlu0 %v328, 90
        %v470 = vpop.permute.xlu0 %469
        %471 = vrot.lane.b32.xlu0 %v356, 90
        %v472 = vpop.permute.xlu0 %471
        %vm473 = vcmask 736256
        %v474 = vsel %vm473, %v466, %v468
        %v475 = vsel %vm473, %v468, %v470
        %v476 = vsel %vm473, %v470, %v472
        %480 = vst [vmem:[#allocation2 + $0x60] sm:$0xf] %v474
        %481 = vst [vmem:[#allocation2 + $0x68] sm:$0xf] %v475
        %482 = vst [vmem:[#allocation2 + $0x70] sm:$0xf] %v476
        %v483 = vlaneseq
        %vm484 = vcmp.ge.s32.totalorder %v483, 0
        %vm485 = vcmp.lt.s32.totalorder %v483, 384
        %vm486 = vmand %vm484, %vm485
        %s487 = scalar_lea.vmem [#allocation2], 100
        %488 = vst.msk [vmem:[%s487] ss:$8 sm:$0x7] %vm486, 1.0
        %489 = vst.msk [vmem:[%s487] ss:$8 sm:$0x0] %vm486, 1.0
        %v490 = vld [vmem:[%s206] sm:$0xf]
        %v491 = vld [vmem:[#allocation2] sm:$0xff]
        %v492 = vld [vmem:[#allocation2 + $0x8] sm:$0xff]
        %v493 = vld [vmem:[#allocation2 + $0x10] sm:$0xff]
        %v494 = vld [vmem:[#allocation2 + $0x18] sm:$0xff]
        %v495 = vld [vmem:[#allocation2 + $0x20] sm:$0xff]
        %v496 = vld [vmem:[#allocation2 + $0x28] sm:$0xff]
        %v497 = vld [vmem:[#allocation2 + $0x30] sm:$0xff]
        %v498 = vld [vmem:[#allocation2 + $0x38] sm:$0xff]
        %v499 = vld [vmem:[#allocation2 + $0x40] sm:$0xff]
        %v500 = vld [vmem:[#allocation2 + $0x48] sm:$0xff]
        %v501 = vld [vmem:[#allocation2 + $0x50] sm:$0xff]
        %v502 = vld [vmem:[#allocation2 + $0x58] sm:$0xff]
        %v503 = vld [vmem:[#allocation2 + $0x60] sm:$0x1f]
        %v504 = vld [vmem:[#allocation2 + $0x68] sm:$0x1f]
        %v505 = vld [vmem:[#allocation2 + $0x70] sm:$0x1f]
        %vm506 = vcmask 302080
        %v508 = vsel %vm506, %v490, 0
        %vm510 = vcmask 1044480
        %v512 = vsel %vm510, %v503, 0
        %v515 = vsel %vm510, %v504, 0
        %v518 = vsel %vm510, %v505, 0
        %v520 = vand.u32 %v492, 4294901760
        %521 = vmatprep.subr.mxu0 %v520
        %v522 = vand.u32 %v491, 4294901760
        %523 = vmatpush1.msra.mxu0 %v522
        %v524 = vand.u32 %v495, 4294901760
        %525 = vmatprep.subr.mxu0 %v524
        %v526 = vand.u32 %v494, 4294901760
        %527 = vmatpush1.msra.mxu0 %v526
        %v528 = vand.u32 %v498, 4294901760
        %529 = vmatprep.subr.mxu0 %v528
        %v530 = vand.u32 %v497, 4294901760
        %531 = vmatpush1.msra.mxu0 %v530
        %v532 = vand.u32 %v501, 4294901760
        %533 = vmatprep.subr.mxu0 %v532
        %v534 = vand.u32 %v500, 4294901760
        %535 = vmatpush1.msra.mxu0 %v534
        %v536 = vand.u32 %v515, 4294901760
        %537 = vmatprep.subr.mxu0 %v536
        %v538 = vand.u32 %v512, 4294901760
        %539 = vmatpush1.msra.mxu0 %v538
        %540 = vmatprep.subr.mxu0 0.0
        %541 = vmatpush1.msra.mxu0 0.0
        %542 = vmatprep.subr.mxu0 0.0
        %543 = vmatpush1.msra.mxu0 0.0
        %544 = vmatprep.subr.mxu0 0.0
        %545 = vmatpush1.msra.mxu0 0.0
        %546 = vmatprep.subr.mxu0 0.0
        %547 = vmatpush1.msra.mxu0 0.0
        %548 = vmatprep.subr.mxu0 0.0
        %549 = vmatpush1.msra.mxu0 0.0
        %550 = vmatprep.subr.mxu0 0.0
        %551 = vmatpush1.msra.mxu0 0.0
        %552 = vmatprep.subr.mxu0 0.0
        %553 = vmatpush1.msra.mxu0 0.0
        %554 = vmatprep.subr.mxu0 0.0
        %555 = vmatpush1.msra.mxu0 0.0
        %556 = vmatprep.subr.mxu0 0.0
        %557 = vmatpush1.msra.mxu0 0.0
        %558 = vmatprep.subr.mxu0 0.0
        %559 = vmatpush1.msra.mxu0 0.0
        %560 = vmatprep.subr.mxu0 0.0
        %561 = vmatpush1.msra.mxu0 0.0
        %562 = vmatprep.subr.mxu0 0.0
        %563 = vmatpush1.msra.mxu0 0.0
        %564 = vmatprep.subr.mxu0 0.0
        %565 = vmatpush1.msra.mxu0 0.0
        %566 = vmatprep.subr.mxu0 0.0
        %567 = vmatpush1.msra.mxu0 0.0
        %568 = vmatprep.subr.mxu0 0.0
        %569 = vmatpush1.msra.mxu0 0.0
        %570 = vmatprep.subr.mxu0 0.0
        %571 = vmatpush1.msra.mxu0 0.0
        %572 = vmatprep.subr.mxu0 0.0
        %573 = vmatpush1.msra.mxu0 0.0
        %574 = vmatprep.subr.mxu0 0.0
        %575 = vmatpush1.msra.mxu0 0.0
        %576 = vmatprep.subr.mxu0 0.0
        %577 = vmatpush1.msra.mxu0 0.0
        %578 = vmatprep.subr.mxu0 0.0
        %579 = vmatpush1.msra.mxu0 0.0
        %580 = vmatprep.subr.mxu0 0.0
        %581 = vmatpush1.msra.mxu0 0.0
        %582 = vmatprep.subr.mxu0 0.0
        %583 = vmatpush1.msra.mxu0 0.0
        %584 = vmatprep.subr.mxu0 0.0
        %585 = vmatpush1.msra.mxu0 0.0
        %586 = vmatprep.subr.mxu0 0.0
        %587 = vmatpush1.msra.mxu0 0.0
        %588 = vmatprep.subr.mxu0 0.0
        %589 = vmatpush1.msra.mxu0 0.0
        %590 = vmatprep.subr.mxu0 0.0
        %591 = vmatpush1.msra.mxu0 0.0
        %592 = vmatprep.subr.mxu0 0.0
        %593 = vmatpush1.msra.mxu0 0.0
        %594 = vmatprep.mubr.f32.mxu0 0.0
        %v595 = vand.u32 %v508, 4294901760
        %v596 = vsub.f32 %v508, %v595
        %v597 = vand.u32 %v596, 4294901760
        %v598 = vsub.f32 %v596, %v597
        %v599 = vand.u32 %v598, 4294901760
        %600 = vmatmul.mubr.f32.gmra.mrb[0].mxu0 %v599
        %v601 = vpop.f32.mrb[0].mxu0
        %v602 = vadd.f32 0.0, %v601
        %v603 = vpop.f32.mrb[0].mxu0
        %v604 = vadd.f32 0.0, %v603
        %605 = vdwg.mxu0
        %v606 = vand.u32 %v492, 4294901760
        %v607 = vsub.f32 %v492, %v606
        %v608 = vand.u32 %v607, 4294901760
        %v609 = vsub.f32 %v607, %v608
        %v610 = vand.u32 %v609, 4294901760
        %611 = vmatprep.subr.mxu0 %v610
        %v612 = vand.u32 %v491, 4294901760
        %v613 = vsub.f32 %v491, %v612
        %v614 = vand.u32 %v613, 4294901760
        %v615 = vsub.f32 %v613, %v614
        %v616 = vand.u32 %v615, 4294901760
        %617 = vmatpush1.msra.mxu0 %v616
        %v618 = vand.u32 %v495, 4294901760
        %v619 = vsub.f32 %v495, %v618
        %v620 = vand.u32 %v619, 4294901760
        %v621 = vsub.f32 %v619, %v620
        %v622 = vand.u32 %v621, 4294901760
        %623 = vmatprep.subr.mxu0 %v622
        %v624 = vand.u32 %v494, 4294901760
        %v625 = vsub.f32 %v494, %v624
        %v626 = vand.u32 %v625, 4294901760
        %v627 = vsub.f32 %v625, %v626
        %v628 = vand.u32 %v627, 4294901760
        %629 = vmatpush1.msra.mxu0 %v628
        %v630 = vand.u32 %v498, 4294901760
        %v631 = vsub.f32 %v498, %v630
        %v632 = vand.u32 %v631, 4294901760
        %v633 = vsub.f32 %v631, %v632
        %v634 = vand.u32 %v633, 4294901760
        %635 = vmatprep.subr.mxu0 %v634
        %v636 = vand.u32 %v497, 4294901760
        %v637 = vsub.f32 %v497, %v636
        %v638 = vand.u32 %v637, 4294901760
        %v639 = vsub.f32 %v637, %v638
        %v640 = vand.u32 %v639, 4294901760
        %641 = vmatpush1.msra.mxu0 %v640
        %v642 = vand.u32 %v501, 4294901760
        %v643 = vsub.f32 %v501, %v642
        %v644 = vand.u32 %v643, 4294901760
        %v645 = vsub.f32 %v643, %v644
        %v646 = vand.u32 %v645, 4294901760
        %647 = vmatprep.subr.mxu0 %v646
        %v648 = vand.u32 %v500, 4294901760
        %v649 = vsub.f32 %v500, %v648
        %v650 = vand.u32 %v649, 4294901760
        %v651 = vsub.f32 %v649, %v650
        %v652 = vand.u32 %v651, 4294901760
        %653 = vmatpush1.msra.mxu0 %v652
        %v654 = vand.u32 %v515, 4294901760
        %v655 = vsub.f32 %v515, %v654
        %v656 = vand.u32 %v655, 4294901760
        %v657 = vsub.f32 %v655, %v656
        %v658 = vand.u32 %v657, 4294901760
        %659 = vmatprep.subr.mxu0 %v658
        %v660 = vand.u32 %v512, 4294901760
        %v661 = vsub.f32 %v512, %v660
        %v662 = vand.u32 %v661, 4294901760
        %v663 = vsub.f32 %v661, %v662
        %v664 = vand.u32 %v663, 4294901760
        %665 = vmatpush1.msra.mxu0 %v664
        %666 = vmatprep.subr.mxu0 0.0
        %667 = vmatpush1.msra.mxu0 0.0
        %668 = vmatprep.subr.mxu0 0.0
        %669 = vmatpush1.msra.mxu0 0.0
        %670 = vmatprep.subr.mxu0 0.0
        %671 = vmatpush1.msra.mxu0 0.0
        %672 = vmatprep.subr.mxu0 0.0
        %673 = vmatpush1.msra.mxu0 0.0
        %674 = vmatprep.subr.mxu0 0.0
        %675 = vmatpush1.msra.mxu0 0.0
        %676 = vmatprep.subr.mxu0 0.0
        %677 = vmatpush1.msra.mxu0 0.0
        %678 = vmatprep.subr.mxu0 0.0
        %679 = vmatpush1.msra.mxu0 0.0
        %680 = vmatprep.subr.mxu0 0.0
        %681 = vmatpush1.msra.mxu0 0.0
        %682 = vmatprep.subr.mxu0 0.0
        %683 = vmatpush1.msra.mxu0 0.0
        %684 = vmatprep.subr.mxu0 0.0
        %685 = vmatpush1.msra.mxu0 0.0
        %686 = vmatprep.subr.mxu0 0.0
        %687 = vmatpush1.msra.mxu0 0.0
        %688 = vmatprep.subr.mxu0 0.0
        %689 = vmatpush1.msra.mxu0 0.0
        %690 = vmatprep.subr.mxu0 0.0
        %691 = vmatpush1.msra.mxu0 0.0
        %692 = vmatprep.subr.mxu0 0.0
        %693 = vmatpush1.msra.mxu0 0.0
        %694 = vmatprep.subr.mxu0 0.0
        %695 = vmatpush1.msra.mxu0 0.0
        %696 = vmatprep.subr.mxu0 0.0
        %697 = vmatpush1.msra.mxu0 0.0
        %698 = vmatprep.subr.mxu0 0.0
        %699 = vmatpush1.msra.mxu0 0.0
        %700 = vmatprep.subr.mxu0 0.0
        %701 = vmatpush1.msra.mxu0 0.0
        %702 = vmatprep.subr.mxu0 0.0
        %703 = vmatpush1.msra.mxu0 0.0
        %704 = vmatprep.subr.mxu0 0.0
        %705 = vmatpush1.msra.mxu0 0.0
        %706 = vmatprep.subr.mxu0 0.0
        %707 = vmatpush1.msra.mxu0 0.0
        %708 = vmatprep.subr.mxu0 0.0
        %709 = vmatpush1.msra.mxu0 0.0
        %710 = vmatprep.subr.mxu0 0.0
        %711 = vmatpush1.msra.mxu0 0.0
        %712 = vmatprep.subr.mxu0 0.0
        %713 = vmatpush1.msra.mxu0 0.0
        %714 = vmatprep.subr.mxu0 0.0
        %715 = vmatpush1.msra.mxu0 0.0
        %716 = vmatprep.subr.mxu0 0.0
        %717 = vmatpush1.msra.mxu0 0.0
        %718 = vmatprep.subr.mxu0 0.0
        %719 = vmatpush1.msra.mxu0 0.0
        %720 = vmatprep.mubr.f32.mxu0 0.0
        %v721 = vand.u32 %v508, 4294901760
        %722 = vmatmul.mubr.f32.gmra.mrb[0].mxu0 %v721
        %v723 = vpop.f32.mrb[0].mxu0
        %v724 = vadd.f32 %v602, %v723
        %v725 = vpop.f32.mrb[0].mxu0
        %v726 = vadd.f32 %v604, %v725
        %727 = vdwg.mxu0
        %v728 = vand.u32 %v492, 4294901760
        %v729 = vsub.f32 %v492, %v728
        %730 = vmatprep.subr.mxu0 %v729
        %v731 = vand.u32 %v491, 4294901760
        %v732 = vsub.f32 %v491, %v731
        %733 = vmatpush1.msra.mxu0 %v732
        %v734 = vand.u32 %v495, 4294901760
        %v735 = vsub.f32 %v495, %v734
        %736 = vmatprep.subr.mxu0 %v735
        %v737 = vand.u32 %v494, 4294901760
        %v738 = vsub.f32 %v494, %v737
        %739 = vmatpush1.msra.mxu0 %v738
        %v740 = vand.u32 %v498, 4294901760
        %v741 = vsub.f32 %v498, %v740
        %742 = vmatprep.subr.mxu0 %v741
        %v743 = vand.u32 %v497, 4294901760
        %v744 = vsub.f32 %v497, %v743
        %745 = vmatpush1.msra.mxu0 %v744
        %v746 = vand.u32 %v501, 4294901760
        %v747 = vsub.f32 %v501, %v746
        %748 = vmatprep.subr.mxu0 %v747
        %v749 = vand.u32 %v500, 4294901760
        %v750 = vsub.f32 %v500, %v749
        %751 = vmatpush1.msra.mxu0 %v750
        %v752 = vand.u32 %v515, 4294901760
        %v753 = vsub.f32 %v515, %v752
        %754 = vmatprep.subr.mxu0 %v753
        %v755 = vand.u32 %v512, 4294901760
        %v756 = vsub.f32 %v512, %v755
        %757 = vmatpush1.msra.mxu0 %v756
        %758 = vmatprep.subr.mxu0 0.0
        %759 = vmatpush1.msra.mxu0 0.0
        %760 = vmatprep.subr.mxu0 0.0
        %761 = vmatpush1.msra.mxu0 0.0
        %762 = vmatprep.subr.mxu0 0.0
        %763 = vmatpush1.msra.mxu0 0.0
        %764 = vmatprep.subr.mxu0 0.0
        %765 = vmatpush1.msra.mxu0 0.0
        %766 = vmatprep.subr.mxu0 0.0
        %767 = vmatpush1.msra.mxu0 0.0
        %768 = vmatprep.subr.mxu0 0.0
        %769 = vmatpush1.msra.mxu0 0.0
        %770 = vmatprep.subr.mxu0 0.0
        %771 = vmatpush1.msra.mxu0 0.0
        %772 = vmatprep.subr.mxu0 0.0
        %773 = vmatpush1.msra.mxu0 0.0
        %774 = vmatprep.subr.mxu0 0.0
        %775 = vmatpush1.msra.mxu0 0.0
        %776 = vmatprep.subr.mxu0 0.0
        %777 = vmatpush1.msra.mxu0 0.0
        %778 = vmatprep.subr.mxu0 0.0
        %779 = vmatpush1.msra.mxu0 0.0
        %780 = vmatprep.subr.mxu0 0.0
        %781 = vmatpush1.msra.mxu0 0.0
        %782 = vmatprep.subr.mxu0 0.0
        %783 = vmatpush1.msra.mxu0 0.0
        %784 = vmatprep.subr.mxu0 0.0
        %785 = vmatpush1.msra.mxu0 0.0
        %786 = vmatprep.subr.mxu0 0.0
        %787 = vmatpush1.msra.mxu0 0.0
        %788 = vmatprep.subr.mxu0 0.0
        %789 = vmatpush1.msra.mxu0 0.0
        %790 = vmatprep.subr.mxu0 0.0
        %791 = vmatpush1.msra.mxu0 0.0
        %792 = vmatprep.subr.mxu0 0.0
        %793 = vmatpush1.msra.mxu0 0.0
        %794 = vmatprep.subr.mxu0 0.0
        %795 = vmatpush1.msra.mxu0 0.0
        %796 = vmatprep.subr.mxu0 0.0
        %797 = vmatpush1.msra.mxu0 0.0
        %798 = vmatprep.subr.mxu0 0.0
        %799 = vmatpush1.msra.mxu0 0.0
        %800 = vmatprep.subr.mxu0 0.0
        %801 = vmatpush1.msra.mxu0 0.0
        %802 = vmatprep.subr.mxu0 0.0
        %803 = vmatpush1.msra.mxu0 0.0
        %804 = vmatprep.subr.mxu0 0.0
        %805 = vmatpush1.msra.mxu0 0.0
        %806 = vmatprep.subr.mxu0 0.0
        %807 = vmatpush1.msra.mxu0 0.0
        %808 = vmatprep.subr.mxu0 0.0
        %809 = vmatpush1.msra.mxu0 0.0
        %810 = vmatprep.subr.mxu0 0.0
        %811 = vmatpush1.msra.mxu0 0.0
        %812 = vmatprep.mubr.f32.mxu0 0.0
        %v813 = vand.u32 %v508, 4294901760
        %v814 = vsub.f32 %v508, %v813
        %815 = vmatmul.mubr.f32.gmra.mrb[0].mxu0 %v814
        %v816 = vpop.f32.mrb[0].mxu0
        %v817 = vadd.f32 %v724, %v816
        %v818 = vpop.f32.mrb[0].mxu0
        %v819 = vadd.f32 %v726, %v818
        %820 = vdwg.mxu0
        %v821 = vand.u32 %v492, 4294901760
        %822 = vmatprep.subr.mxu0 %v821
        %v823 = vand.u32 %v491, 4294901760
        %824 = vmatpush1.msra.mxu0 %v823
        %v825 = vand.u32 %v495, 4294901760
        %826 = vmatprep.subr.mxu0 %v825
        %v827 = vand.u32 %v494, 4294901760
        %828 = vmatpush1.msra.mxu0 %v827
        %v829 = vand.u32 %v498, 4294901760
        %830 = vmatprep.subr.mxu0 %v829
        %v831 = vand.u32 %v497, 4294901760
        %832 = vmatpush1.msra.mxu0 %v831
        %v833 = vand.u32 %v501, 4294901760
        %834 = vmatprep.subr.mxu0 %v833
        %v835 = vand.u32 %v500, 4294901760
        %836 = vmatpush1.msra.mxu0 %v835
        %v837 = vand.u32 %v515, 4294901760
        %838 = vmatprep.subr.mxu0 %v837
        %v839 = vand.u32 %v512, 4294901760
        %840 = vmatpush1.msra.mxu0 %v839
        %841 = vmatprep.subr.mxu0 0.0
        %842 = vmatpush1.msra.mxu0 0.0
        %843 = vmatprep.subr.mxu0 0.0
        %844 = vmatpush1.msra.mxu0 0.0
        %845 = vmatprep.subr.mxu0 0.0
        %846 = vmatpush1.msra.mxu0 0.0
        %847 = vmatprep.subr.mxu0 0.0
        %848 = vmatpush1.msra.mxu0 0.0
        %849 = vmatprep.subr.mxu0 0.0
        %850 = vmatpush1.msra.mxu0 0.0
        %851 = vmatprep.subr.mxu0 0.0
        %852 = vmatpush1.msra.mxu0 0.0
        %853 = vmatprep.subr.mxu0 0.0
        %854 = vmatpush1.msra.mxu0 0.0
        %855 = vmatprep.subr.mxu0 0.0
        %856 = vmatpush1.msra.mxu0 0.0
        %857 = vmatprep.subr.mxu0 0.0
        %858 = vmatpush1.msra.mxu0 0.0
        %859 = vmatprep.subr.mxu0 0.0
        %860 = vmatpush1.msra.mxu0 0.0
        %861 = vmatprep.subr.mxu0 0.0
        %862 = vmatpush1.msra.mxu0 0.0
        %863 = vmatprep.subr.mxu0 0.0
        %864 = vmatpush1.msra.mxu0 0.0
        %865 = vmatprep.subr.mxu0 0.0
        %866 = vmatpush1.msra.mxu0 0.0
        %867 = vmatprep.subr.mxu0 0.0
        %868 = vmatpush1.msra.mxu0 0.0
        %869 = vmatprep.subr.mxu0 0.0
        %870 = vmatpush1.msra.mxu0 0.0
        %871 = vmatprep.subr.mxu0 0.0
        %872 = vmatpush1.msra.mxu0 0.0
        %873 = vmatprep.subr.mxu0 0.0
        %874 = vmatpush1.msra.mxu0 0.0
        %875 = vmatprep.subr.mxu0 0.0
        %876 = vmatpush1.msra.mxu0 0.0
        %877 = vmatprep.subr.mxu0 0.0
        %878 = vmatpush1.msra.mxu0 0.0
        %879 = vmatprep.subr.mxu0 0.0
        %880 = vmatpush1.msra.mxu0 0.0
        %881 = vmatprep.subr.mxu0 0.0
        %882 = vmatpush1.msra.mxu0 0.0
        %883 = vmatprep.subr.mxu0 0.0
        %884 = vmatpush1.msra.mxu0 0.0
        %885 = vmatprep.subr.mxu0 0.0
        %886 = vmatpush1.msra.mxu0 0.0
        %887 = vmatprep.subr.mxu0 0.0
        %888 = vmatpush1.msra.mxu0 0.0
        %889 = vmatprep.subr.mxu0 0.0
        %890 = vmatpush1.msra.mxu0 0.0
        %891 = vmatprep.subr.mxu0 0.0
        %892 = vmatpush1.msra.mxu0 0.0
        %893 = vmatprep.subr.mxu0 0.0
        %894 = vmatpush1.msra.mxu0 0.0
        %895 = vmatprep.mubr.f32.mxu0 0.0
        %v896 = vand.u32 %v508, 4294901760
        %v897 = vsub.f32 %v508, %v896
        %v898 = vand.u32 %v897, 4294901760
        %899 = vmatmul.mubr.f32.gmra.mrb[0].mxu0 %v898
        %v900 = vpop.f32.mrb[0].mxu0
        %v901 = vadd.f32 %v817, %v900
        %v902 = vpop.f32.mrb[0].mxu0
        %v903 = vadd.f32 %v819, %v902
        %904 = vdwg.mxu0
        %v905 = vand.u32 %v492, 4294901760
        %v906 = vsub.f32 %v492, %v905
        %v907 = vand.u32 %v906, 4294901760
        %908 = vmatprep.subr.mxu0 %v907
        %v909 = vand.u32 %v491, 4294901760
        %v910 = vsub.f32 %v491, %v909
        %v911 = vand.u32 %v910, 4294901760
        %912 = vmatpush1.msra.mxu0 %v911
        %v913 = vand.u32 %v495, 4294901760
        %v914 = vsub.f32 %v495, %v913
        %v915 = vand.u32 %v914, 4294901760
        %916 = vmatprep.subr.mxu0 %v915
        %v917 = vand.u32 %v494, 4294901760
        %v918 = vsub.f32 %v494, %v917
        %v919 = vand.u32 %v918, 4294901760
        %920 = vmatpush1.msra.mxu0 %v919
        %v921 = vand.u32 %v498, 4294901760
        %v922 = vsub.f32 %v498, %v921
        %v923 = vand.u32 %v922, 4294901760
        %924 = vmatprep.subr.mxu0 %v923
        %v925 = vand.u32 %v497, 4294901760
        %v926 = vsub.f32 %v497, %v925
        %v927 = vand.u32 %v926, 4294901760
        %928 = vmatpush1.msra.mxu0 %v927
        %v929 = vand.u32 %v501, 4294901760
        %v930 = vsub.f32 %v501, %v929
        %v931 = vand.u32 %v930, 4294901760
        %932 = vmatprep.subr.mxu0 %v931
        %v933 = vand.u32 %v500, 4294901760
        %v934 = vsub.f32 %v500, %v933
        %v935 = vand.u32 %v934, 4294901760
        %936 = vmatpush1.msra.mxu0 %v935
        %v937 = vand.u32 %v515, 4294901760
        %v938 = vsub.f32 %v515, %v937
        %v939 = vand.u32 %v938, 4294901760
        %940 = vmatprep.subr.mxu0 %v939
        %v941 = vand.u32 %v512, 4294901760
        %v942 = vsub.f32 %v512, %v941
        %v943 = vand.u32 %v942, 4294901760
        %944 = vmatpush1.msra.mxu0 %v943
        %945 = vmatprep.subr.mxu0 0.0
        %946 = vmatpush1.msra.mxu0 0.0
        %947 = vmatprep.subr.mxu0 0.0
        %948 = vmatpush1.msra.mxu0 0.0
        %949 = vmatprep.subr.mxu0 0.0
        %950 = vmatpush1.msra.mxu0 0.0
        %951 = vmatprep.subr.mxu0 0.0
        %952 = vmatpush1.msra.mxu0 0.0
        %953 = vmatprep.subr.mxu0 0.0
        %954 = vmatpush1.msra.mxu0 0.0
        %955 = vmatprep.subr.mxu0 0.0
        %956 = vmatpush1.msra.mxu0 0.0
        %957 = vmatprep.subr.mxu0 0.0
        %958 = vmatpush1.msra.mxu0 0.0
        %959 = vmatprep.subr.mxu0 0.0
        %960 = vmatpush1.msra.mxu0 0.0
        %961 = vmatprep.subr.mxu0 0.0
        %962 = vmatpush1.msra.mxu0 0.0
        %963 = vmatprep.subr.mxu0 0.0
        %964 = vmatpush1.msra.mxu0 0.0
        %965 = vmatprep.subr.mxu0 0.0
        %966 = vmatpush1.msra.mxu0 0.0
        %967 = vmatprep.subr.mxu0 0.0
        %968 = vmatpush1.msra.mxu0 0.0
        %969 = vmatprep.subr.mxu0 0.0
        %970 = vmatpush1.msra.mxu0 0.0
        %971 = vmatprep.subr.mxu0 0.0
        %972 = vmatpush1.msra.mxu0 0.0
        %973 = vmatprep.subr.mxu0 0.0
        %974 = vmatpush1.msra.mxu0 0.0
        %975 = vmatprep.subr.mxu0 0.0
        %976 = vmatpush1.msra.mxu0 0.0
        %977 = vmatprep.subr.mxu0 0.0
        %978 = vmatpush1.msra.mxu0 0.0
        %979 = vmatprep.subr.mxu0 0.0
        %980 = vmatpush1.msra.mxu0 0.0
        %981 = vmatprep.subr.mxu0 0.0
        %982 = vmatpush1.msra.mxu0 0.0
        %983 = vmatprep.subr.mxu0 0.0
        %984 = vmatpush1.msra.mxu0 0.0
        %985 = vmatprep.subr.mxu0 0.0
        %986 = vmatpush1.msra.mxu0 0.0
        %987 = vmatprep.subr.mxu0 0.0
        %988 = vmatpush1.msra.mxu0 0.0
        %989 = vmatprep.subr.mxu0 0.0
        %990 = vmatpush1.msra.mxu0 0.0
        %991 = vmatprep.subr.mxu0 0.0
        %992 = vmatpush1.msra.mxu0 0.0
        %993 = vmatprep.subr.mxu0 0.0
        %994 = vmatpush1.msra.mxu0 0.0
        %995 = vmatprep.subr.mxu0 0.0
        %996 = vmatpush1.msra.mxu0 0.0
        %997 = vmatprep.subr.mxu0 0.0
        %998 = vmatpush1.msra.mxu0 0.0
        %999 = vmatprep.mubr.f32.mxu0 0.0
        %v1000 = vand.u32 %v508, 4294901760
        %1001 = vmatmul.mubr.f32.gmra.mrb[0].mxu0 %v1000
        %v1002 = vpop.f32.mrb[0].mxu0
        %v1003 = vadd.f32 %v901, %v1002
        %v1004 = vpop.f32.mrb[0].mxu0
        %v1005 = vadd.f32 %v903, %v1004
        %1006 = vdwg.mxu0
        %v1007 = vand.u32 %v492, 4294901760
        %1008 = vmatprep.subr.mxu0 %v1007
        %v1009 = vand.u32 %v491, 4294901760
        %1010 = vmatpush1.msra.mxu0 %v1009
        %v1011 = vand.u32 %v495, 4294901760
        %1012 = vmatprep.subr.mxu0 %v1011
        %v1013 = vand.u32 %v494, 4294901760
        %1014 = vmatpush1.msra.mxu0 %v1013
        %v1015 = vand.u32 %v498, 4294901760
        %1016 = vmatprep.subr.mxu0 %v1015
        %v1017 = vand.u32 %v497, 4294901760
        %1018 = vmatpush1.msra.mxu0 %v1017
        %v1019 = vand.u32 %v501, 4294901760
        %1020 = vmatprep.subr.mxu0 %v1019
        %v1021 = vand.u32 %v500, 4294901760
        %1022 = vmatpush1.msra.mxu0 %v1021
        %v1023 = vand.u32 %v515, 4294901760
        %1024 = vmatprep.subr.mxu0 %v1023
        %v1025 = vand.u32 %v512, 4294901760
        %1026 = vmatpush1.msra.mxu0 %v1025
        %1027 = vmatprep.subr.mxu0 0.0
        %1028 = vmatpush1.msra.mxu0 0.0
        %1029 = vmatprep.subr.mxu0 0.0
        %1030 = vmatpush1.msra.mxu0 0.0
        %1031 = vmatprep.subr.mxu0 0.0
        %1032 = vmatpush1.msra.mxu0 0.0
        %1033 = vmatprep.subr.mxu0 0.0
        %1034 = vmatpush1.msra.mxu0 0.0
        %1035 = vmatprep.subr.mxu0 0.0
        %1036 = vmatpush1.msra.mxu0 0.0
        %1037 = vmatprep.subr.mxu0 0.0
        %1038 = vmatpush1.msra.mxu0 0.0
        %1039 = vmatprep.subr.mxu0 0.0
        %1040 = vmatpush1.msra.mxu0 0.0
        %1041 = vmatprep.subr.mxu0 0.0
        %1042 = vmatpush1.msra.mxu0 0.0
        %1043 = vmatprep.subr.mxu0 0.0
        %1044 = vmatpush1.msra.mxu0 0.0
        %1045 = vmatprep.subr.mxu0 0.0
        %1046 = vmatpush1.msra.mxu0 0.0
        %1047 = vmatprep.subr.mxu0 0.0
        %1048 = vmatpush1.msra.mxu0 0.0
        %1049 = vmatprep.subr.mxu0 0.0
        %1050 = vmatpush1.msra.mxu0 0.0
        %1051 = vmatprep.subr.mxu0 0.0
        %1052 = vmatpush1.msra.mxu0 0.0
        %1053 = vmatprep.subr.mxu0 0.0
        %1054 = vmatpush1.msra.mxu0 0.0
        %1055 = vmatprep.subr.mxu0 0.0
        %1056 = vmatpush1.msra.mxu0 0.0
        %1057 = vmatprep.subr.mxu0 0.0
        %1058 = vmatpush1.msra.mxu0 0.0
        %1059 = vmatprep.subr.mxu0 0.0
        %1060 = vmatpush1.msra.mxu0 0.0
        %1061 = vmatprep.subr.mxu0 0.0
        %1062 = vmatpush1.msra.mxu0 0.0
        %1063 = vmatprep.subr.mxu0 0.0
        %1064 = vmatpush1.msra.mxu0 0.0
        %1065 = vmatprep.subr.mxu0 0.0
        %1066 = vmatpush1.msra.mxu0 0.0
        %1067 = vmatprep.subr.mxu0 0.0
        %1068 = vmatpush1.msra.mxu0 0.0
        %1069 = vmatprep.subr.mxu0 0.0
        %1070 = vmatpush1.msra.mxu0 0.0
        %1071 = vmatprep.subr.mxu0 0.0
        %1072 = vmatpush1.msra.mxu0 0.0
        %1073 = vmatprep.subr.mxu0 0.0
        %1074 = vmatpush1.msra.mxu0 0.0
        %1075 = vmatprep.subr.mxu0 0.0
        %1076 = vmatpush1.msra.mxu0 0.0
        %1077 = vmatprep.subr.mxu0 0.0
        %1078 = vmatpush1.msra.mxu0 0.0
        %1079 = vmatprep.subr.mxu0 0.0
        %1080 = vmatpush1.msra.mxu0 0.0
        %1081 = vmatprep.mubr.f32.mxu0 0.0
        %v1082 = vand.u32 %v508, 4294901760
        %1083 = vmatmul.mubr.f32.gmra.mrb[0].mxu0 %v1082
        %v1084 = vpop.f32.mrb[0].mxu0
        %v1085 = vadd.f32 %v1003, %v1084
        %v1086 = vpop.f32.mrb[0].mxu0
        %v1087 = vadd.f32 %v1005, %v1086
        %1088 = vdwg.mxu0
        %1089 = vmatprep.subr.mxu0 0.0
        %v1090 = vand.u32 %v493, 4294901760
        %1091 = vmatpush1.msra.mxu0 %v1090
        %1092 = vmatprep.subr.mxu0 0.0
        %v1093 = vand.u32 %v496, 4294901760
        %1094 = vmatpush1.msra.mxu0 %v1093
        %1095 = vmatprep.subr.mxu0 0.0
        %v1096 = vand.u32 %v499, 4294901760
        %1097 = vmatpush1.msra.mxu0 %v1096
        %1098 = vmatprep.subr.mxu0 0.0
        %v1099 = vand.u32 %v502, 4294901760
        %1100 = vmatpush1.msra.mxu0 %v1099
        %1101 = vmatprep.subr.mxu0 0.0
        %v1102 = vand.u32 %v518, 4294901760
        %1103 = vmatpush1.msra.mxu0 %v1102
        %1104 = vmatprep.subr.mxu0 0.0
        %1105 = vmatpush1.msra.mxu0 0.0
        %1106 = vmatprep.subr.mxu0 0.0
        %1107 = vmatpush1.msra.mxu0 0.0
        %1108 = vmatprep.subr.mxu0 0.0
        %1109 = vmatpush1.msra.mxu0 0.0
        %1110 = vmatprep.subr.mxu0 0.0
        %1111 = vmatpush1.msra.mxu0 0.0
        %1112 = vmatprep.subr.mxu0 0.0
        %1113 = vmatpush1.msra.mxu0 0.0
        %1114 = vmatprep.subr.mxu0 0.0
        %1115 = vmatpush1.msra.mxu0 0.0
        %1116 = vmatprep.subr.mxu0 0.0
        %1117 = vmatpush1.msra.mxu0 0.0
        %1118 = vmatprep.subr.mxu0 0.0
        %1119 = vmatpush1.msra.mxu0 0.0
        %1120 = vmatprep.subr.mxu0 0.0
        %1121 = vmatpush1.msra.mxu0 0.0
        %1122 = vmatprep.subr.mxu0 0.0
        %1123 = vmatpush1.msra.mxu0 0.0
        %1124 = vmatprep.subr.mxu0 0.0
        %1125 = vmatpush1.msra.mxu0 0.0
        %1126 = vmatprep.subr.mxu0 0.0
        %1127 = vmatpush1.msra.mxu0 0.0
        %1128 = vmatprep.subr.mxu0 0.0
        %1129 = vmatpush1.msra.mxu0 0.0
        %1130 = vmatprep.subr.mxu0 0.0
        %1131 = vmatpush1.msra.mxu0 0.0
        %1132 = vmatprep.subr.mxu0 0.0
        %1133 = vmatpush1.msra.mxu0 0.0
        %1134 = vmatprep.subr.mxu0 0.0
        %1135 = vmatpush1.msra.mxu0 0.0
        %1136 = vmatprep.subr.mxu0 0.0
        %1137 = vmatpush1.msra.mxu0 0.0
        %1138 = vmatprep.subr.mxu0 0.0
        %1139 = vmatpush1.msra.mxu0 0.0
        %1140 = vmatprep.subr.mxu0 0.0
        %1141 = vmatpush1.msra.mxu0 0.0
        %1142 = vmatprep.subr.mxu0 0.0
        %1143 = vmatpush1.msra.mxu0 0.0
        %1144 = vmatprep.subr.mxu0 0.0
        %1145 = vmatpush1.msra.mxu0 0.0
        %1146 = vmatprep.subr.mxu0 0.0
        %1147 = vmatpush1.msra.mxu0 0.0
        %1148 = vmatprep.subr.mxu0 0.0
        %1149 = vmatpush1.msra.mxu0 0.0
        %1150 = vmatprep.subr.mxu0 0.0
        %1151 = vmatpush1.msra.mxu0 0.0
        %1152 = vmatprep.subr.mxu0 0.0
        %1153 = vmatpush1.msra.mxu0 0.0
        %1154 = vmatprep.subr.mxu0 0.0
        %1155 = vmatpush1.msra.mxu0 0.0
        %1156 = vmatprep.subr.mxu0 0.0
        %1157 = vmatpush1.msra.mxu0 0.0
        %1158 = vmatprep.mubr.f32.mxu0 0.0
        %v1159 = vand.u32 %v508, 4294901760
        %v1160 = vsub.f32 %v508, %v1159
        %v1161 = vand.u32 %v1160, 4294901760
        %v1162 = vsub.f32 %v1160, %v1161
        %v1163 = vand.u32 %v1162, 4294901760
        %1164 = vmatmul.mubr.f32.gmra.mrb[0].mxu0 %v1163
        %v1165 = vpop.f32.mrb[0].mxu0
        %v1166 = vadd.f32 0.0, %v1165
        %v1167 = vpop.f32.mrb[0].mxu0
        %1168 = vdwg.mxu0
        %1169 = vmatprep.subr.mxu0 0.0
        %v1170 = vand.u32 %v493, 4294901760
        %v1171 = vsub.f32 %v493, %v1170
        %v1172 = vand.u32 %v1171, 4294901760
        %v1173 = vsub.f32 %v1171, %v1172
        %v1174 = vand.u32 %v1173, 4294901760
        %1175 = vmatpush1.msra.mxu0 %v1174
        %1176 = vmatprep.subr.mxu0 0.0
        %v1177 = vand.u32 %v496, 4294901760
        %v1178 = vsub.f32 %v496, %v1177
        %v1179 = vand.u32 %v1178, 4294901760
        %v1180 = vsub.f32 %v1178, %v1179
        %v1181 = vand.u32 %v1180, 4294901760
        %1182 = vmatpush1.msra.mxu0 %v1181
        %1183 = vmatprep.subr.mxu0 0.0
        %v1184 = vand.u32 %v499, 4294901760
        %v1185 = vsub.f32 %v499, %v1184
        %v1186 = vand.u32 %v1185, 4294901760
        %v1187 = vsub.f32 %v1185, %v1186
        %v1188 = vand.u32 %v1187, 4294901760
        %1189 = vmatpush1.msra.mxu0 %v1188
        %1190 = vmatprep.subr.mxu0 0.0
        %v1191 = vand.u32 %v502, 4294901760
        %v1192 = vsub.f32 %v502, %v1191
        %v1193 = vand.u32 %v1192, 4294901760
        %v1194 = vsub.f32 %v1192, %v1193
        %v1195 = vand.u32 %v1194, 4294901760
        %1196 = vmatpush1.msra.mxu0 %v1195
        %1197 = vmatprep.subr.mxu0 0.0
        %v1198 = vand.u32 %v518, 4294901760
        %v1199 = vsub.f32 %v518, %v1198
        %v1200 = vand.u32 %v1199, 4294901760
        %v1201 = vsub.f32 %v1199, %v1200
        %v1202 = vand.u32 %v1201, 4294901760
        %1203 = vmatpush1.msra.mxu0 %v1202
        %1204 = vmatprep.subr.mxu0 0.0
        %1205 = vmatpush1.msra.mxu0 0.0
        %1206 = vmatprep.subr.mxu0 0.0
        %1207 = vmatpush1.msra.mxu0 0.0
        %1208 = vmatprep.subr.mxu0 0.0
        %1209 = vmatpush1.msra.mxu0 0.0
        %1210 = vmatprep.subr.mxu0 0.0
        %1211 = vmatpush1.msra.mxu0 0.0
        %1212 = vmatprep.subr.mxu0 0.0
        %1213 = vmatpush1.msra.mxu0 0.0
        %1214 = vmatprep.subr.mxu0 0.0
        %1215 = vmatpush1.msra.mxu0 0.0
        %1216 = vmatprep.subr.mxu0 0.0
        %1217 = vmatpush1.msra.mxu0 0.0
        %1218 = vmatprep.subr.mxu0 0.0
        %1219 = vmatpush1.msra.mxu0 0.0
        %1220 = vmatprep.subr.mxu0 0.0
        %1221 = vmatpush1.msra.mxu0 0.0
        %1222 = vmatprep.subr.mxu0 0.0
        %1223 = vmatpush1.msra.mxu0 0.0
        %1224 = vmatprep.subr.mxu0 0.0
        %1225 = vmatpush1.msra.mxu0 0.0
        %1226 = vmatprep.subr.mxu0 0.0
        %1227 = vmatpush1.msra.mxu0 0.0
        %1228 = vmatprep.subr.mxu0 0.0
        %1229 = vmatpush1.msra.mxu0 0.0
        %1230 = vmatprep.subr.mxu0 0.0
        %1231 = vmatpush1.msra.mxu0 0.0
        %1232 = vmatprep.subr.mxu0 0.0
        %1233 = vmatpush1.msra.mxu0 0.0
        %1234 = vmatprep.subr.mxu0 0.0
        %1235 = vmatpush1.msra.mxu0 0.0
        %1236 = vmatprep.subr.mxu0 0.0
        %1237 = vmatpush1.msra.mxu0 0.0
        %1238 = vmatprep.subr.mxu0 0.0
        %1239 = vmatpush1.msra.mxu0 0.0
        %1240 = vmatprep.subr.mxu0 0.0
        %1241 = vmatpush1.msra.mxu0 0.0
        %1242 = vmatprep.subr.mxu0 0.0
        %1243 = vmatpush1.msra.mxu0 0.0
        %1244 = vmatprep.subr.mxu0 0.0
        %1245 = vmatpush1.msra.mxu0 0.0
        %1246 = vmatprep.subr.mxu0 0.0
        %1247 = vmatpush1.msra.mxu0 0.0
        %1248 = vmatprep.subr.mxu0 0.0
        %1249 = vmatpush1.msra.mxu0 0.0
        %1250 = vmatprep.subr.mxu0 0.0
        %1251 = vmatpush1.msra.mxu0 0.0
        %1252 = vmatprep.subr.mxu0 0.0
        %1253 = vmatpush1.msra.mxu0 0.0
        %1254 = vmatprep.subr.mxu0 0.0
        %1255 = vmatpush1.msra.mxu0 0.0
        %1256 = vmatprep.subr.mxu0 0.0
        %1257 = vmatpush1.msra.mxu0 0.0
        %1258 = vmatprep.mubr.f32.mxu0 0.0
        %v1259 = vand.u32 %v508, 4294901760
        %1260 = vmatmul.mubr.f32.gmra.mrb[0].mxu0 %v1259
        %v1261 = vpop.f32.mrb[0].mxu0
        %v1262 = vadd.f32 %v1166, %v1261
        %v1263 = vpop.f32.mrb[0].mxu0
        %1264 = vdwg.mxu0
        %1265 = vmatprep.subr.mxu0 0.0
        %v1266 = vand.u32 %v493, 4294901760
        %v1267 = vsub.f32 %v493, %v1266
        %1268 = vmatpush1.msra.mxu0 %v1267
        %1269 = vmatprep.subr.mxu0 0.0
        %v1270 = vand.u32 %v496, 4294901760
        %v1271 = vsub.f32 %v496, %v1270
        %1272 = vmatpush1.msra.mxu0 %v1271
        %1273 = vmatprep.subr.mxu0 0.0
        %v1274 = vand.u32 %v499, 4294901760
        %v1275 = vsub.f32 %v499, %v1274
        %1276 = vmatpush1.msra.mxu0 %v1275
        %1277 = vmatprep.subr.mxu0 0.0
        %v1278 = vand.u32 %v502, 4294901760
        %v1279 = vsub.f32 %v502, %v1278
        %1280 = vmatpush1.msra.mxu0 %v1279
        %1281 = vmatprep.subr.mxu0 0.0
        %v1282 = vand.u32 %v518, 4294901760
        %v1283 = vsub.f32 %v518, %v1282
        %1284 = vmatpush1.msra.mxu0 %v1283
        %1285 = vmatprep.subr.mxu0 0.0
        %1286 = vmatpush1.msra.mxu0 0.0
        %1287 = vmatprep.subr.mxu0 0.0
        %1288 = vmatpush1.msra.mxu0 0.0
        %1289 = vmatprep.subr.mxu0 0.0
        %1290 = vmatpush1.msra.mxu0 0.0
        %1291 = vmatprep.subr.mxu0 0.0
        %1292 = vmatpush1.msra.mxu0 0.0
        %1293 = vmatprep.subr.mxu0 0.0
        %1294 = vmatpush1.msra.mxu0 0.0
        %1295 = vmatprep.subr.mxu0 0.0
        %1296 = vmatpush1.msra.mxu0 0.0
        %1297 = vmatprep.subr.mxu0 0.0
        %1298 = vmatpush1.msra.mxu0 0.0
        %1299 = vmatprep.subr.mxu0 0.0
        %1300 = vmatpush1.msra.mxu0 0.0
        %1301 = vmatprep.subr.mxu0 0.0
        %1302 = vmatpush1.msra.mxu0 0.0
        %1303 = vmatprep.subr.mxu0 0.0
        %1304 = vmatpush1.msra.mxu0 0.0
        %1305 = vmatprep.subr.mxu0 0.0
        %1306 = vmatpush1.msra.mxu0 0.0
        %1307 = vmatprep.subr.mxu0 0.0
        %1308 = vmatpush1.msra.mxu0 0.0
        %1309 = vmatprep.subr.mxu0 0.0
        %1310 = vmatpush1.msra.mxu0 0.0
        %1311 = vmatprep.subr.mxu0 0.0
        %1312 = vmatpush1.msra.mxu0 0.0
        %1313 = vmatprep.subr.mxu0 0.0
        %1314 = vmatpush1.msra.mxu0 0.0
        %1315 = vmatprep.subr.mxu0 0.0
        %1316 = vmatpush1.msra.mxu0 0.0
        %1317 = vmatprep.subr.mxu0 0.0
        %1318 = vmatpush1.msra.mxu0 0.0
        %1319 = vmatprep.subr.mxu0 0.0
        %1320 = vmatpush1.msra.mxu0 0.0
        %1321 = vmatprep.subr.mxu0 0.0
        %1322 = vmatpush1.msra.mxu0 0.0
        %1323 = vmatprep.subr.mxu0 0.0
        %1324 = vmatpush1.msra.mxu0 0.0
        %1325 = vmatprep.subr.mxu0 0.0
        %1326 = vmatpush1.msra.mxu0 0.0
        %1327 = vmatprep.subr.mxu0 0.0
        %1328 = vmatpush1.msra.mxu0 0.0
        %1329 = vmatprep.subr.mxu0 0.0
        %1330 = vmatpush1.msra.mxu0 0.0
        %1331 = vmatprep.subr.mxu0 0.0
        %1332 = vmatpush1.msra.mxu0 0.0
        %1333 = vmatprep.subr.mxu0 0.0
        %1334 = vmatpush1.msra.mxu0 0.0
        %1335 = vmatprep.subr.mxu0 0.0
        %1336 = vmatpush1.msra.mxu0 0.0
        %1337 = vmatprep.subr.mxu0 0.0
        %1338 = vmatpush1.msra.mxu0 0.0
        %1339 = vmatprep.mubr.f32.mxu0 0.0
        %v1340 = vand.u32 %v508, 4294901760
        %v1341 = vsub.f32 %v508, %v1340
        %1342 = vmatmul.mubr.f32.gmra.mrb[0].mxu0 %v1341
        %v1343 = vpop.f32.mrb[0].mxu0
        %v1344 = vadd.f32 %v1262, %v1343
        %v1345 = vpop.f32.mrb[0].mxu0
        %1346 = vdwg.mxu0
        %1347 = vmatprep.subr.mxu0 0.0
        %v1348 = vand.u32 %v493, 4294901760
        %1349 = vmatpush1.msra.mxu0 %v1348
        %1350 = vmatprep.subr.mxu0 0.0
        %v1351 = vand.u32 %v496, 4294901760
        %1352 = vmatpush1.msra.mxu0 %v1351
        %1353 = vmatprep.subr.mxu0 0.0
        %v1354 = vand.u32 %v499, 4294901760
        %1355 = vmatpush1.msra.mxu0 %v1354
        %1356 = vmatprep.subr.mxu0 0.0
        %v1357 = vand.u32 %v502, 4294901760
        %1358 = vmatpush1.msra.mxu0 %v1357
        %1359 = vmatprep.subr.mxu0 0.0
        %v1360 = vand.u32 %v518, 4294901760
        %1361 = vmatpush1.msra.mxu0 %v1360
        %1362 = vmatprep.subr.mxu0 0.0
        %1363 = vmatpush1.msra.mxu0 0.0
        %1364 = vmatprep.subr.mxu0 0.0
        %1365 = vmatpush1.msra.mxu0 0.0
        %1366 = vmatprep.subr.mxu0 0.0
        %1367 = vmatpush1.msra.mxu0 0.0
        %1368 = vmatprep.subr.mxu0 0.0
        %1369 = vmatpush1.msra.mxu0 0.0
        %1370 = vmatprep.subr.mxu0 0.0
        %1371 = vmatpush1.msra.mxu0 0.0
        %1372 = vmatprep.subr.mxu0 0.0
        %1373 = vmatpush1.msra.mxu0 0.0
        %1374 = vmatprep.subr.mxu0 0.0
        %1375 = vmatpush1.msra.mxu0 0.0
        %1376 = vmatprep.subr.mxu0 0.0
        %1377 = vmatpush1.msra.mxu0 0.0
        %1378 = vmatprep.subr.mxu0 0.0
        %1379 = vmatpush1.msra.mxu0 0.0
        %1380 = vmatprep.subr.mxu0 0.0
        %1381 = vmatpush1.msra.mxu0 0.0
        %1382 = vmatprep.subr.mxu0 0.0
        %1383 = vmatpush1.msra.mxu0 0.0
        %1384 = vmatprep.subr.mxu0 0.0
        %1385 = vmatpush1.msra.mxu0 0.0
        %1386 = vmatprep.subr.mxu0 0.0
        %1387 = vmatpush1.msra.mxu0 0.0
        %1388 = vmatprep.subr.mxu0 0.0
        %1389 = vmatpush1.msra.mxu0 0.0
        %1390 = vmatprep.subr.mxu0 0.0
        %1391 = vmatpush1.msra.mxu0 0.0
        %1392 = vmatprep.subr.mxu0 0.0
        %1393 = vmatpush1.msra.mxu0 0.0
        %1394 = vmatprep.subr.mxu0 0.0
        %1395 = vmatpush1.msra.mxu0 0.0
        %1396 = vmatprep.subr.mxu0 0.0
        %1397 = vmatpush1.msra.mxu0 0.0
        %1398 = vmatprep.subr.mxu0 0.0
        %1399 = vmatpush1.msra.mxu0 0.0
        %1400 = vmatprep.subr.mxu0 0.0
        %1401 = vmatpush1.msra.mxu0 0.0
        %1402 = vmatprep.subr.mxu0 0.0
        %1403 = vmatpush1.msra.mxu0 0.0
        %1404 = vmatprep.subr.mxu0 0.0
        %1405 = vmatpush1.msra.mxu0 0.0
        %1406 = vmatprep.subr.mxu0 0.0
        %1407 = vmatpush1.msra.mxu0 0.0
        %1408 = vmatprep.subr.mxu0 0.0
        %1409 = vmatpush1.msra.mxu0 0.0
        %1410 = vmatprep.subr.mxu0 0.0
        %1411 = vmatpush1.msra.mxu0 0.0
        %1412 = vmatprep.subr.mxu0 0.0
        %1413 = vmatpush1.msra.mxu0 0.0
        %1414 = vmatprep.subr.mxu0 0.0
        %1415 = vmatpush1.msra.mxu0 0.0
        %1416 = vmatprep.mubr.f32.mxu0 0.0
        %v1417 = vand.u32 %v508, 4294901760
        %v1418 = vsub.f32 %v508, %v1417
        %v1419 = vand.u32 %v1418, 4294901760
        %1420 = vmatmul.mubr.f32.gmra.mrb[0].mxu0 %v1419
        %v1421 = vpop.f32.mrb[0].mxu0
        %v1422 = vadd.f32 %v1344, %v1421
        %v1423 = vpop.f32.mrb[0].mxu0
        %1424 = vdwg.mxu0
        %1425 = vmatprep.subr.mxu0 0.0
        %v1426 = vand.u32 %v493, 4294901760
        %v1427 = vsub.f32 %v493, %v1426
        %v1428 = vand.u32 %v1427, 4294901760
        %1429 = vmatpush1.msra.mxu0 %v1428
        %1430 = vmatprep.subr.mxu0 0.0
        %v1431 = vand.u32 %v496, 4294901760
        %v1432 = vsub.f32 %v496, %v1431
        %v1433 = vand.u32 %v1432, 4294901760
        %1434 = vmatpush1.msra.mxu0 %v1433
        %1435 = vmatprep.subr.mxu0 0.0
        %v1436 = vand.u32 %v499, 4294901760
        %v1437 = vsub.f32 %v499, %v1436
        %v1438 = vand.u32 %v1437, 4294901760
        %1439 = vmatpush1.msra.mxu0 %v1438
        %1440 = vmatprep.subr.mxu0 0.0
        %v1441 = vand.u32 %v502, 4294901760
        %v1442 = vsub.f32 %v502, %v1441
        %v1443 = vand.u32 %v1442, 4294901760
        %1444 = vmatpush1.msra.mxu0 %v1443
        %1445 = vmatprep.subr.mxu0 0.0
        %v1446 = vand.u32 %v518, 4294901760
        %v1447 = vsub.f32 %v518, %v1446
        %v1448 = vand.u32 %v1447, 4294901760
        %1449 = vmatpush1.msra.mxu0 %v1448
        %1450 = vmatprep.subr.mxu0 0.0
        %1451 = vmatpush1.msra.mxu0 0.0
        %1452 = vmatprep.subr.mxu0 0.0
        %1453 = vmatpush1.msra.mxu0 0.0
        %1454 = vmatprep.subr.mxu0 0.0
        %1455 = vmatpush1.msra.mxu0 0.0
        %1456 = vmatprep.subr.mxu0 0.0
        %1457 = vmatpush1.msra.mxu0 0.0
        %1458 = vmatprep.subr.mxu0 0.0
        %1459 = vmatpush1.msra.mxu0 0.0
        %1460 = vmatprep.subr.mxu0 0.0
        %1461 = vmatpush1.msra.mxu0 0.0
        %1462 = vmatprep.subr.mxu0 0.0
        %1463 = vmatpush1.msra.mxu0 0.0
        %1464 = vmatprep.subr.mxu0 0.0
        %1465 = vmatpush1.msra.mxu0 0.0
        %1466 = vmatprep.subr.mxu0 0.0
        %1467 = vmatpush1.msra.mxu0 0.0
        %1468 = vmatprep.subr.mxu0 0.0
        %1469 = vmatpush1.msra.mxu0 0.0
        %1470 = vmatprep.subr.mxu0 0.0
        %1471 = vmatpush1.msra.mxu0 0.0
        %1472 = vmatprep.subr.mxu0 0.0
        %1473 = vmatpush1.msra.mxu0 0.0
        %1474 = vmatprep.subr.mxu0 0.0
        %1475 = vmatpush1.msra.mxu0 0.0
        %1476 = vmatprep.subr.mxu0 0.0
        %1477 = vmatpush1.msra.mxu0 0.0
        %1478 = vmatprep.subr.mxu0 0.0
        %1479 = vmatpush1.msra.mxu0 0.0
        %1480 = vmatprep.subr.mxu0 0.0
        %1481 = vmatpush1.msra.mxu0 0.0
        %1482 = vmatprep.subr.mxu0 0.0
        %1483 = vmatpush1.msra.mxu0 0.0
        %1484 = vmatprep.subr.mxu0 0.0
        %1485 = vmatpush1.msra.mxu0 0.0
        %1486 = vmatprep.subr.mxu0 0.0
        %1487 = vmatpush1.msra.mxu0 0.0
        %1488 = vmatprep.subr.mxu0 0.0
        %1489 = vmatpush1.msra.mxu0 0.0
        %1490 = vmatprep.subr.mxu0 0.0
        %1491 = vmatpush1.msra.mxu0 0.0
        %1492 = vmatprep.subr.mxu0 0.0
        %1493 = vmatpush1.msra.mxu0 0.0
        %1494 = vmatprep.subr.mxu0 0.0
        %1495 = vmatpush1.msra.mxu0 0.0
        %1496 = vmatprep.subr.mxu0 0.0
        %1497 = vmatpush1.msra.mxu0 0.0
        %1498 = vmatprep.subr.mxu0 0.0
        %1499 = vmatpush1.msra.mxu0 0.0
        %1500 = vmatprep.subr.mxu0 0.0
        %1501 = vmatpush1.msra.mxu0 0.0
        %1502 = vmatprep.subr.mxu0 0.0
        %1503 = vmatpush1.msra.mxu0 0.0
        %1504 = vmatprep.mubr.f32.mxu0 0.0
        %v1505 = vand.u32 %v508, 4294901760
        %1506 = vmatmul.mubr.f32.gmra.mrb[0].mxu0 %v1505
        %v1507 = vpop.f32.mrb[0].mxu0
        %v1508 = vadd.f32 %v1422, %v1507
        %v1509 = vpop.f32.mrb[0].mxu0
        %1510 = vdwg.mxu0
        %1511 = vmatprep.subr.mxu0 0.0
        %v1512 = vand.u32 %v493, 4294901760
        %1513 = vmatpush1.msra.mxu0 %v1512
        %1514 = vmatprep.subr.mxu0 0.0
        %v1515 = vand.u32 %v496, 4294901760
        %1516 = vmatpush1.msra.mxu0 %v1515
        %1517 = vmatprep.subr.mxu0 0.0
        %v1518 = vand.u32 %v499, 4294901760
        %1519 = vmatpush1.msra.mxu0 %v1518
        %1520 = vmatprep.subr.mxu0 0.0
        %v1521 = vand.u32 %v502, 4294901760
        %1522 = vmatpush1.msra.mxu0 %v1521
        %1523 = vmatprep.subr.mxu0 0.0
        %v1524 = vand.u32 %v518, 4294901760
        %1525 = vmatpush1.msra.mxu0 %v1524
        %1526 = vmatprep.subr.mxu0 0.0
        %1527 = vmatpush1.msra.mxu0 0.0
        %1528 = vmatprep.subr.mxu0 0.0
        %1529 = vmatpush1.msra.mxu0 0.0
        %1530 = vmatprep.subr.mxu0 0.0
        %1531 = vmatpush1.msra.mxu0 0.0
        %1532 = vmatprep.subr.mxu0 0.0
        %1533 = vmatpush1.msra.mxu0 0.0
        %1534 = vmatprep.subr.mxu0 0.0
        %1535 = vmatpush1.msra.mxu0 0.0
        %1536 = vmatprep.subr.mxu0 0.0
        %1537 = vmatpush1.msra.mxu0 0.0
        %1538 = vmatprep.subr.mxu0 0.0
        %1539 = vmatpush1.msra.mxu0 0.0
        %1540 = vmatprep.subr.mxu0 0.0
        %1541 = vmatpush1.msra.mxu0 0.0
        %1542 = vmatprep.subr.mxu0 0.0
        %1543 = vmatpush1.msra.mxu0 0.0
        %1544 = vmatprep.subr.mxu0 0.0
        %1545 = vmatpush1.msra.mxu0 0.0
        %1546 = vmatprep.subr.mxu0 0.0
        %1547 = vmatpush1.msra.mxu0 0.0
        %1548 = vmatprep.subr.mxu0 0.0
        %1549 = vmatpush1.msra.mxu0 0.0
        %1550 = vmatprep.subr.mxu0 0.0
        %1551 = vmatpush1.msra.mxu0 0.0
        %1552 = vmatprep.subr.mxu0 0.0
        %1553 = vmatpush1.msra.mxu0 0.0
        %1554 = vmatprep.subr.mxu0 0.0
        %1555 = vmatpush1.msra.mxu0 0.0
        %1556 = vmatprep.subr.mxu0 0.0
        %1557 = vmatpush1.msra.mxu0 0.0
        %1558 = vmatprep.subr.mxu0 0.0
        %1559 = vmatpush1.msra.mxu0 0.0
        %1560 = vmatprep.subr.mxu0 0.0
        %1561 = vmatpush1.msra.mxu0 0.0
        %1562 = vmatprep.subr.mxu0 0.0
        %1563 = vmatpush1.msra.mxu0 0.0
        %1564 = vmatprep.subr.mxu0 0.0
        %1565 = vmatpush1.msra.mxu0 0.0
        %1566 = vmatprep.subr.mxu0 0.0
        %1567 = vmatpush1.msra.mxu0 0.0
        %1568 = vmatprep.subr.mxu0 0.0
        %1569 = vmatpush1.msra.mxu0 0.0
        %1570 = vmatprep.subr.mxu0 0.0
        %1571 = vmatpush1.msra.mxu0 0.0
        %1572 = vmatprep.subr.mxu0 0.0
        %1573 = vmatpush1.msra.mxu0 0.0
        %1574 = vmatprep.subr.mxu0 0.0
        %1575 = vmatpush1.msra.mxu0 0.0
        %1576 = vmatprep.subr.mxu0 0.0
        %1577 = vmatpush1.msra.mxu0 0.0
        %1578 = vmatprep.subr.mxu0 0.0
        %1579 = vmatpush1.msra.mxu0 0.0
        %1580 = vmatprep.mubr.f32.mxu0 0.0
        %v1581 = vand.u32 %v508, 4294901760
        %1582 = vmatmul.mubr.f32.gmra.mrb[0].mxu0 %v1581
        %v1583 = vpop.f32.mrb[0].mxu0
        %v1584 = vadd.f32 %v1508, %v1583
        %v1585 = vpop.f32.mrb[0].mxu0
        %1586 = vdwg.mxu0
        %v1589 = vcombine.low %v1085, %v1087
        %1591 = vst [vmem:[%s233] sm:$0xff] %v1589
        %1592 = vst [vmem:[%s233 + $0x8] sm:$0xf] %v1584
        %s1593 = sand.u32 %s102, 1
        %s1594 = scalar_lea.sflag [#allocation5], %s1593
        %s1595 = sand.u32 %s102, 1
        %s1596 = smul.addr %s1595, 12
        %s1597 = scalar_lea.vmem [#allocation9], %s1596
        // Predicated region
        $region45: #{tpu_custom_call.1} parent=31 // pred_check
          %p1598 = pneg %p112
        $region46: #{tpu_custom_call.1} parent=31 // pred_check_branch
          %1600 = sbr.rel (%p1598) target = $region48
        $region47: #{tpu_custom_call.1} parent=31 // pred_region
          %s1602 = ssub.s32 192, 192
          %1603 = vsyncadd %s1594, %s1602
          %s1604 = smul.addr %s21, 3
          %s1605 = smul.addr %s1604, 64
          %s1606 = scalar_lea.hbm %s3, %s1605
          %s1608 = sshll.u32 %s1597, 4
          %s1609 = int_to_ptr.vmem [resolvable:$true] %s1608
          %1611 = dma.vmem_to_hbm [thread:$0]  %s1609, 192, %s1606, %s1594
        $region48: #{tpu_custom_call.1} parent=31 // pred_fallthru
          _
      $region32: #{tpu_custom_call.1} parent=5 // pred_fallthru
        _
      %p1612 = scmp.le.s32.totalorder 2, %s16
      // Predicated region
      $region49: #{tpu_custom_call.1} parent=5 // pred_check
        %p1613 = pneg %p1612
      $region50: #{tpu_custom_call.1} parent=5 // pred_check_branch
        %1615 = sbr.rel (%p1613) target = $region52
      $region51: #{tpu_custom_call.1} parent=5 // pred_region
        %s1616 = ssub.s32 %s16, 2
        // Predicated region
        $region53: #{tpu_custom_call.1} parent=51 // pred_check
          %p1617 = pneg %p118
        $region54: #{tpu_custom_call.1} parent=51 // pred_check_branch
          %1619 = sbr.rel (%p1617) target = $region56
        $region55: #{tpu_custom_call.1} parent=51 // pred_region
          %s1620 = sand.u32 %s103, 1
          %s1621 = scalar_lea.sflag [#allocation5], %s1620
          %s1622 = sand.u32 %s103, 1
          %s1623 = smul.addr %s1622, 12
          %s1624 = scalar_lea.vmem [#allocation9], %s1623
          %1625 = dma.done %s1621, 192
        $region56: #{tpu_custom_call.1} parent=51 // pred_fallthru
          _
      $region52: #{tpu_custom_call.1} parent=5 // pred_fallthru
        _
    $region6: #{tpu_custom_call.1} parent=1 // loop_footer
      %s20 = sadd.s32 1, %s16
    $region7: #{tpu_custom_call.1} parent=1 // loop_footer_branch
      %15 = sbr.rel target = $region3
    $region8: #{tpu_custom_call.1} parent=1 // loop_exit
      _
    %1626 = vsyncpa [#allocation4], 1
    %s1627 = scalar_lea.sflag [#allocation4], 1
    %1628 = vsyncpa %s1627, 1
    %1629 = vsyncpa [#allocation7], 1
    %1630 = vsyncpa [#allocation5], 1
    %s1631 = scalar_lea.sflag [#allocation5], 1
    %1632 = vsyncpa %s1631, 1

</llo_original>
